<compile_context>
chip_gen: v7x
topology: tpu7x:2x2x1
jax: 0.10.0
libtpu: 0.0.40
codegen_flags: <defaults>
</compile_context>

<pallas_src>
import functools

import jax
import jax.numpy as jnp
from jax import lax
from jax.experimental import pallas as pl
from jax.experimental.pallas import tpu as pltpu


def _cross_attn_kernel(x_ref, ctx_ref, wq_ref, wk_ref, wv_ref, wo_ref, bo_ref,
                       o_ref, k_scr, v_scr, attn_scr, *,
                       heads, dim_head, compute_dtype, exp_dtype, cache_kv):
    # Grid: (batch, q_tile).  Per step:
    #   x_ref:   (1, TQ, Dq)        ctx_ref: (1, Nk, Dc)
    #   wq_ref:  (Dq, inner)        wk_ref/wv_ref: (Dc, inner)
    #   wo_ref:  (inner, Dq)        bo_ref: (1, Dq) f32
    #   o_ref:   (1, TQ, Dq)
    #   k_scr/v_scr: (Nk, inner)    attn_scr: (TQ, inner)   (compute_dtype)

    def _project_kv():
        ctx = ctx_ref[0]                                        # (Nk, Dc)
        k_scr[...] = jnp.dot(ctx, wk_ref[...],
                             preferred_element_type=jnp.float32
                             ).astype(compute_dtype)            # (Nk, inner)
        v_scr[...] = jnp.dot(ctx, wv_ref[...],
                             preferred_element_type=jnp.float32
                             ).astype(compute_dtype)            # (Nk, inner)

    if cache_kv:
        # K/V persist in VMEM scratch across query tiles of the same batch.
        pl.when(pl.program_id(1) == 0)(_project_kv)
    else:
        _project_kv()

    # Full-width Q projection (scale already folded into Wq on the host).
    x = x_ref[0]                                                # (TQ, Dq)
    q = jnp.dot(x, wq_ref[...],
                preferred_element_type=jnp.float32)             # (TQ, inner) f32
    q = q.astype(compute_dtype)

    # Per-head attention core (QK^T / softmax / PV) with static lane slices.
    for h in range(heads):
        lo = h * dim_head
        hi = lo + dim_head
        q_h = q[:, lo:hi]                                       # (TQ, dh)
        k_h = k_scr[:, lo:hi]                                   # (Nk, dh)
        v_h = v_scr[:, lo:hi]                                   # (Nk, dh)

        # Contract the last dims of both operands (no k transpose materialized).
        sim = lax.dot_general(q_h, k_h, (((1,), (1,)), ((), ())),
                              preferred_element_type=jnp.float32)  # (TQ, Nk) f32

        # Numerically stable softmax with deferred 1/sum normalization.
        m = jnp.max(sim, axis=-1, keepdims=True)
        z = sim - m
        if exp_dtype is not None:
            z = z.astype(exp_dtype)                             # bf16 exp on v6e/v7x
        p = jnp.exp(z)
        s = jnp.sum(p.astype(jnp.float32), axis=-1, keepdims=True)  # (TQ, 1) f32

        out_h = jnp.dot(p.astype(compute_dtype), v_h,
                        preferred_element_type=jnp.float32)     # (TQ, dh) f32
        out_h = out_h * pl.reciprocal(s, approx=True)           # normalize post-PV
        attn_scr[:, lo:hi] = out_h.astype(compute_dtype)

    # One full-width output projection + bias, single lane-dense store.
    out = jnp.dot(attn_scr[...], wo_ref[...],
                  preferred_element_type=jnp.float32)           # (TQ, Dq) f32
    out = out + bo_ref[...].astype(jnp.float32)
    o_ref[0] = out.astype(o_ref.dtype)

    # TODO(synk): the optional boolean `mask` path (masked_fill_ before the
    # softmax) is not implemented; this kernel covers the mask=None forward.


def _default_q_tile(Nq, Nk, B):
    """VMEM-aware default query tile (multiple of 8, divisor of Nq)."""
    if Nq <= 256:
        TQ = Nq
    else:
        # Bound ~3 live f32 (TQ, Nk) score slabs to ~24 MiB, cap the tile at 512.
        cap = (24 << 20) // max(1, 3 * Nk * 4)
        cap = max(8, min(512, (cap // 8) * 8))
        TQ = None
        t = 8
        while t <= min(Nq, cap):
            if Nq % t == 0:
                TQ = t
            t += 8
        if TQ is None:           # no aligned divisor: use the full extent
            TQ = Nq
    # v7x has 2 TensorCores: make sure there are >= 2 "parallel" grid steps.
    if B == 1 and TQ == Nq and Nq % 16 == 0:
        TQ = Nq // 2
    return TQ


def cross_attention(x, context, wq, wk, wv, wo, bo, *, heads, dim_head,
                    q_tile=None, compute_dtype=None, exp_dtype=None,
                    vmem_limit_bytes=None):
    """x: (B, Nq, Dq), context: (B, Nk, Dc).  Returns (B, Nq, Dq).

    q_tile:        query-tile size (default: VMEM-aware heuristic).
    compute_dtype: matmul-operand dtype (e.g. bf16 on v6e/v7x); accumulation
                   and the softmax max/sum stay f32.
    exp_dtype:     dtype for the softmax exp (bf16 on v6e/v7x; keep None=f32 on v5e).
    """
    B, Nq, Dq = x.shape
    Bc, Nk, Dc = context.shape
    assert Bc == B
    inner = heads * dim_head
    assert wq.shape == (Dq, inner)
    assert wk.shape == (Dc, inner) and wv.shape == (Dc, inner)
    assert wo.shape == (inner, Dq) and bo.shape == (1, Dq)

    out_dtype = x.dtype
    comp = x.dtype if compute_dtype is None else compute_dtype
    scale = float(dim_head) ** -0.5

    if q_tile is None:
        TQ = _default_q_tile(Nq, Nk, B)
    else:
        TQ = min(int(q_tile), Nq)
    assert Nq % TQ == 0, "Nq must be divisible by the query tile size"
    nqt = Nq // TQ

    # K/V caching across query tiles requires sequential ("arbitrary") qi axis.
    if nqt == 1:
        cache_kv, qi_sem = False, "parallel"
    elif B == 1 and nqt == 2:
        # Prefer feeding both v7x TensorCores over caching K/V across 2 tiles.
        cache_kv, qi_sem = False, "parallel"
    else:
        cache_kv, qi_sem = True, "arbitrary"

    # Host-side parameter prep: fold the softmax scale into Wq; cast operands.
    wq2 = (wq.astype(jnp.float32) * scale).astype(comp)
    wk2 = wk.astype(comp)
    wv2 = wv.astype(comp)
    wo2 = wo.astype(comp)
    bo2 = bo.astype(jnp.float32)
    xc = x.astype(comp)
    cc = context.astype(comp)

    kernel = functools.partial(
        _cross_attn_kernel, heads=heads, dim_head=dim_head,
        compute_dtype=comp, exp_dtype=exp_dtype, cache_kv=cache_kv)

    cparams = dict(dimension_semantics=("parallel", qi_sem))

    # VMEM footprint estimate (double-buffered blocks + scratch + intermediates).
    cb = jnp.dtype(comp).itemsize
    ob = jnp.dtype(out_dtype).itemsize
    est = (2 * TQ * Dq * cb                      # x blocks
           + 2 * Nk * Dc * cb                    # context block
           + 2 * (Dq * inner + 2 * Dc * inner + inner * Dq) * cb  # weights
           + 2 * Dq * 4                          # bias
           + 2 * TQ * Dq * ob                    # output blocks
           + 2 * Nk * inner * cb                 # K/V scratch
           + TQ * inner * cb                     # attn scratch
           + 4 * TQ * Nk * 4 + 2 * TQ * inner * 4)  # live f32 intermediates
    if vmem_limit_bytes is None and est > (24 << 20):
        try:
            cap = int(pltpu.get_tpu_info().vmem_capacity_bytes * 3 // 4)
        except Exception:
            cap = 64 << 20
        vmem_limit_bytes = max(32 << 20, min(int(est * 5 // 4), cap))
    if vmem_limit_bytes is not None:
        cparams["vmem_limit_bytes"] = int(vmem_limit_bytes)

    return pl.pallas_call(
        kernel,
        out_shape=jax.ShapeDtypeStruct((B, Nq, Dq), out_dtype),
        grid_spec=pltpu.PrefetchScalarGridSpec(
            num_scalar_prefetch=0,
            grid=(B, nqt),
            in_specs=[
                pl.BlockSpec((1, TQ, Dq), lambda b, qi: (b, qi, 0)),   # x tile
                pl.BlockSpec((1, Nk, Dc), lambda b, qi: (b, 0, 0)),    # context (resident per batch)
                pl.BlockSpec((Dq, inner), lambda b, qi: (0, 0)),       # Wq (full width, scaled)
                pl.BlockSpec((Dc, inner), lambda b, qi: (0, 0)),       # Wk
                pl.BlockSpec((Dc, inner), lambda b, qi: (0, 0)),       # Wv
                pl.BlockSpec((inner, Dq), lambda b, qi: (0, 0)),       # Wo
                pl.BlockSpec((1, Dq), lambda b, qi: (0, 0)),           # bo
            ],
            out_specs=pl.BlockSpec((1, TQ, Dq), lambda b, qi: (b, qi, 0)),
            scratch_shapes=[
                pltpu.VMEM((Nk, inner), comp),   # K (all heads), cached per batch
                pltpu.VMEM((Nk, inner), comp),   # V (all heads), cached per batch
                pltpu.VMEM((TQ, inner), comp),   # concatenated per-head outputs
            ],
        ),
        compiler_params=pltpu.CompilerParams(**cparams),
    )(xc, cc, wq2, wk2, wv2, wo2, bo2)


def reference_cross_attention(x, context, wq, wk, wv, wo, bo, *, heads, dim_head):
    """Pure-JAX reference mirroring the PyTorch forward (mask=None)."""
    B, Nq, _ = x.shape
    scale = float(dim_head) ** -0.5
    q = x @ wq
    k = context @ wk
    v = context @ wv

    def split(t):  # b n (h d) -> (b h) n d
        b, n, _ = t.shape
        return t.reshape(b, n, heads, dim_head).transpose(0, 2, 1, 3).reshape(
            b * heads, n, dim_head)

    q, k, v = map(split, (q, k, v))
    sim = jnp.einsum('bid,bjd->bij', q.astype(jnp.float32),
                     k.astype(jnp.float32)) * scale
    attn = jax.nn.softmax(sim, axis=-1)
    out = jnp.einsum('bij,bjd->bid', attn, v.astype(jnp.float32))
    out = out.reshape(B, heads, Nq, dim_head).transpose(0, 2, 1, 3).reshape(
        B, Nq, heads * dim_head).astype(x.dtype)
    return out @ wo + bo[0]


if __name__ == "__main__":
    # Small shapes consistent with the module: query_dim=32, heads=4, dim_head=8
    # (inner_dim=32); context_dim defaults to query_dim on the self-attention path.
    B, Nq, Nk = 2, 8, 8
    query_dim, heads, dim_head = 32, 4, 8
    context_dim = query_dim
    inner = heads * dim_head

    key = jax.random.PRNGKey(0)
    kx, kc, kq, kk, kv, ko, kb = jax.random.split(key, 7)

    x = jax.random.normal(kx, (B, Nq, query_dim), dtype=jnp.float32)
    context = x  # default(context, x) path in the PyTorch forward

    # Deterministic parameter init (Linear weights stored transposed: in x out).
    wq = jax.random.normal(kq, (query_dim, inner), dtype=jnp.float32) * 0.05
    wk = jax.random.normal(kk, (context_dim, inner), dtype=jnp.float32) * 0.05
    wv = jax.random.normal(kv, (context_dim, inner), dtype=jnp.float32) * 0.05
    wo = jax.random.normal(ko, (inner, query_dim), dtype=jnp.float32) * 0.05
    bo = jax.random.normal(kb, (1, query_dim), dtype=jnp.float32) * 0.05

    # 1) Self-attention, f32 end to end (matches the module's default dtype).
    ref = reference_cross_attention(x, context, wq, wk, wv, wo, bo,
                                    heads=heads, dim_head=dim_head)
    out = cross_attention(x, context, wq, wk, wv, wo, bo,
                          heads=heads, dim_head=dim_head)
    out = jax.block_until_ready(out)
    assert out.shape == (B, Nq, query_dim)
    assert jnp.allclose(out, ref, atol=5e-3, rtol=5e-3), \
        f"f32 max abs err {jnp.max(jnp.abs(out - ref))}"

    # 2) Cross-attention with a non-multiple-of-128 context length (Nk=77).
    ctx77 = jax.random.normal(kc, (B, 77, context_dim), dtype=jnp.float32)
    ref77 = reference_cross_attention(x, ctx77, wq, wk, wv, wo, bo,
                                      heads=heads, dim_head=dim_head)
    out77 = cross_attention(x, ctx77, wq, wk, wv, wo, bo,
                            heads=heads, dim_head=dim_head)
    out77 = jax.block_until_ready(out77)
    assert jnp.allclose(out77, ref77, atol=5e-3, rtol=5e-3), \
        f"Nk=77 max abs err {jnp.max(jnp.abs(out77 - ref77))}"

    # 3) bf16-operand + bf16-exp path (v6e/v7x MXU/EUP optimization).
    out_bf16 = cross_attention(x, context, wq, wk, wv, wo, bo,
                               heads=heads, dim_head=dim_head,
                               compute_dtype=jnp.bfloat16,
                               exp_dtype=jnp.bfloat16)
    out_bf16 = jax.block_until_ready(out_bf16)
    assert jnp.allclose(out_bf16, ref, atol=5e-2, rtol=5e-2), \
        f"bf16 max abs err {jnp.max(jnp.abs(out_bf16 - ref))}"

    # 4) Query tiling path (exercises the cached-K/V "arbitrary" qi axis).
    out_tiled = cross_attention(x, context, wq, wk, wv, wo, bo,
                                heads=heads, dim_head=dim_head, q_tile=Nq)
    out_tiled = jax.block_until_ready(out_tiled)
    assert jnp.allclose(out_tiled, ref, atol=5e-3, rtol=5e-3)

    print("KERNEL_OK")
</pallas_src>

<mosaic_0001>
module attributes {stable_mosaic.version = 11 : i64} {
  func.func @_cross_attn_kernel(%arg0: i32, %arg1: i32, %arg2: memref<1x8x32xf32, #tpu.memory_space<vmem>>, %arg3: memref<1x8x32xf32, #tpu.memory_space<vmem>>, %arg4: memref<32x32xf32, #tpu.memory_space<vmem>>, %arg5: memref<32x32xf32, #tpu.memory_space<vmem>>, %arg6: memref<32x32xf32, #tpu.memory_space<vmem>>, %arg7: memref<32x32xf32, #tpu.memory_space<vmem>>, %arg8: memref<1x32xf32, #tpu.memory_space<vmem>>, %arg9: memref<1x8x32xf32, #tpu.memory_space<vmem>>, %arg10: memref<8x32xf32, #tpu.memory_space<vmem>>, %arg11: memref<8x32xf32, #tpu.memory_space<vmem>>, %arg12: memref<8x32xf32, #tpu.memory_space<vmem>>) attributes {dimension_semantics = [#tpu.dimension_semantics<parallel>, #tpu.dimension_semantics<parallel>], iteration_bounds = array<i64: 2, 1>, scalar_prefetch = 0 : i64, scratch_operands = 3 : i64, tpu.core_type = #tpu.core_type<tc>, window_params = [{transform_indices = @transform_0, window_bounds = array<i64: 1, 8, 32>}, {transform_indices = @transform_1, window_bounds = array<i64: 1, 8, 32>}, {pipeline_mode = #tpu.pipeline_mode<synchronous>, transform_indices = @transform_2, window_bounds = array<i64: 32, 32>}, {pipeline_mode = #tpu.pipeline_mode<synchronous>, transform_indices = @transform_3, window_bounds = array<i64: 32, 32>}, {pipeline_mode = #tpu.pipeline_mode<synchronous>, transform_indices = @transform_4, window_bounds = array<i64: 32, 32>}, {pipeline_mode = #tpu.pipeline_mode<synchronous>, transform_indices = @transform_5, window_bounds = array<i64: 32, 32>}, {pipeline_mode = #tpu.pipeline_mode<synchronous>, transform_indices = @transform_6, window_bounds = array<i64: 1, 32>}, {transform_indices = @transform_7, window_bounds = array<i64: 1, 8, 32>}]} {
    %c0 = arith.constant 0 : index
    %c0_0 = arith.constant 0 : index
    %c0_1 = arith.constant 0 : index
    %0 = vector.load %arg3[%c0, %c0_0, %c0_1] : memref<1x8x32xf32, #tpu.memory_space<vmem>>, vector<1x8x32xf32>
    %1 = vector.shape_cast %0 : vector<1x8x32xf32> to vector<8x32xf32>
    %c0_2 = arith.constant 0 : index
    %c0_3 = arith.constant 0 : index
    %2 = vector.load %arg5[%c0_2, %c0_3] : memref<32x32xf32, #tpu.memory_space<vmem>>, vector<32x32xf32>
    %cst = arith.constant dense<0.000000e+00> : vector<8x32xf32>
    %3 = tpu.matmul %1, %2, %cst {dimension_numbers = #tpu.dot_dimension_numbers<[1], [0], [0], [1], [0, 0, 1, 1], [], []>} : vector<8x32xf32>, vector<32x32xf32>, vector<8x32xf32> -> vector<8x32xf32>
    %c0_4 = arith.constant 0 : index
    %c0_5 = arith.constant 0 : index
    %4 = vector.load %arg10[%c0_4, %c0_5] : memref<8x32xf32, #tpu.memory_space<vmem>>, vector<8x32xf32>
    tpu.vector_store %arg10[%c0_4, %c0_5], %3 {strides = array<i32>} : memref<8x32xf32, #tpu.memory_space<vmem>>, vector<8x32xf32>,
    %c0_6 = arith.constant 0 : index
    %c0_7 = arith.constant 0 : index
    %5 = vector.load %arg6[%c0_6, %c0_7] : memref<32x32xf32, #tpu.memory_space<vmem>>, vector<32x32xf32>
    %cst_8 = arith.constant dense<0.000000e+00> : vector<8x32xf32>
    %6 = tpu.matmul %1, %5, %cst_8 {dimension_numbers = #tpu.dot_dimension_numbers<[1], [0], [0], [1], [0, 0, 1, 1], [], []>} : vector<8x32xf32>, vector<32x32xf32>, vector<8x32xf32> -> vector<8x32xf32>
    %c0_9 = arith.constant 0 : index
    %c0_10 = arith.constant 0 : index
    %7 = vector.load %arg11[%c0_9, %c0_10] : memref<8x32xf32, #tpu.memory_space<vmem>>, vector<8x32xf32>
    tpu.vector_store %arg11[%c0_9, %c0_10], %6 {strides = array<i32>} : memref<8x32xf32, #tpu.memory_space<vmem>>, vector<8x32xf32>,
    %c0_11 = arith.constant 0 : index
    %c0_12 = arith.constant 0 : index
    %c0_13 = arith.constant 0 : index
    %8 = vector.load %arg2[%c0_11, %c0_12, %c0_13] : memref<1x8x32xf32, #tpu.memory_space<vmem>>, vector<1x8x32xf32>
    %9 = vector.shape_cast %8 : vector<1x8x32xf32> to vector<8x32xf32>
    %c0_14 = arith.constant 0 : index
    %c0_15 = arith.constant 0 : index
    %10 = vector.load %arg4[%c0_14, %c0_15] : memref<32x32xf32, #tpu.memory_space<vmem>>, vector<32x32xf32>
    %cst_16 = arith.constant dense<0.000000e+00> : vector<8x32xf32>
    %11 = tpu.matmul %9, %10, %cst_16 {dimension_numbers = #tpu.dot_dimension_numbers<[1], [0], [0], [1], [0, 0, 1, 1], [], []>} : vector<8x32xf32>, vector<32x32xf32>, vector<8x32xf32> -> vector<8x32xf32>
    %12 = vector.extract_strided_slice %11 {offsets = [0, 0], sizes = [8, 8], strides = [1, 1]} : vector<8x32xf32> to vector<8x8xf32>
    %c0_17 = arith.constant 0 : index
    %c0_18 = arith.constant 0 : index
    %13 = vector.load %arg10[%c0_17, %c0_18] : memref<8x32xf32, #tpu.memory_space<vmem>>, vector<8x8xf32>
    %c0_19 = arith.constant 0 : index
    %c0_20 = arith.constant 0 : index
    %14 = vector.load %arg11[%c0_19, %c0_20] : memref<8x32xf32, #tpu.memory_space<vmem>>, vector<8x8xf32>
    %cst_21 = arith.constant dense<0.000000e+00> : vector<8x8xf32>
    %15 = tpu.matmul %12, %13, %cst_21 {dimension_numbers = #tpu.dot_dimension_numbers<[1], [1], [0], [0], [0, 0, 1, 0], [], []>} : vector<8x8xf32>, vector<8x8xf32>, vector<8x8xf32> -> vector<8x8xf32>
    %cst_22 = arith.constant dense<0xFF800000> : vector<8xf32>
    %16 = vector.multi_reduction <maximumf>, %15, %cst_22 [1] : vector<8x8xf32> to vector<8xf32>
    %17 = vector.shape_cast %16 : vector<8xf32> to vector<8x1xf32>
    %18 = vector.broadcast %17 : vector<8x1xf32> to vector<8x8xf32>
    %19 = arith.subf %15, %18 : vector<8x8xf32>
    %20 = math.exp %19 : vector<8x8xf32>
    %cst_23 = arith.constant dense<0.000000e+00> : vector<8xf32>
    %21 = vector.multi_reduction <add>, %20, %cst_23 [1] : vector<8x8xf32> to vector<8xf32>
    %22 = vector.shape_cast %21 : vector<8xf32> to vector<8x1xf32>
    %cst_24 = arith.constant dense<0.000000e+00> : vector<8x8xf32>
    %23 = tpu.matmul %20, %14, %cst_24 {dimension_numbers = #tpu.dot_dimension_numbers<[1], [0], [0], [1], [0, 0, 1, 1], [], []>} : vector<8x8xf32>, vector<8x8xf32>, vector<8x8xf32> -> vector<8x8xf32>
    %24 = tpu.reciprocal %22 {approx = true} : vector<8x1xf32> -> vector<8x1xf32>
    %25 = vector.broadcast %24 : vector<8x1xf32> to vector<8x8xf32>
    %26 = arith.mulf %23, %25 : vector<8x8xf32>
    %c0_25 = arith.constant 0 : index
    %c0_26 = arith.constant 0 : index
    %27 = vector.load %arg12[%c0_25, %c0_26] : memref<8x32xf32, #tpu.memory_space<vmem>>, vector<8x8xf32>
    tpu.vector_store %arg12[%c0_25, %c0_26], %26 {strides = array<i32>} : memref<8x32xf32, #tpu.memory_space<vmem>>, vector<8x8xf32>,
    %28 = vector.extract_strided_slice %11 {offsets = [0, 8], sizes = [8, 8], strides = [1, 1]} : vector<8x32xf32> to vector<8x8xf32>
    %c0_27 = arith.constant 0 : index
    %c8 = arith.constant 8 : index
    %29 = vector.load %arg10[%c0_27, %c8] : memref<8x32xf32, #tpu.memory_space<vmem>>, vector<8x8xf32>
    %c0_28 = arith.constant 0 : index
    %c8_29 = arith.constant 8 : index
    %30 = vector.load %arg11[%c0_28, %c8_29] : memref<8x32xf32, #tpu.memory_space<vmem>>, vector<8x8xf32>
    %cst_30 = arith.constant dense<0.000000e+00> : vector<8x8xf32>
    %31 = tpu.matmul %28, %29, %cst_30 {dimension_numbers = #tpu.dot_dimension_numbers<[1], [1], [0], [0], [0, 0, 1, 0], [], []>} : vector<8x8xf32>, vector<8x8xf32>, vector<8x8xf32> -> vector<8x8xf32>
    %cst_31 = arith.constant dense<0xFF800000> : vector<8xf32>
    %32 = vector.multi_reduction <maximumf>, %31, %cst_31 [1] : vector<8x8xf32> to vector<8xf32>
    %33 = vector.shape_cast %32 : vector<8xf32> to vector<8x1xf32>
    %34 = vector.broadcast %33 : vector<8x1xf32> to vector<8x8xf32>
    %35 = arith.subf %31, %34 : vector<8x8xf32>
    %36 = math.exp %35 : vector<8x8xf32>
    %cst_32 = arith.constant dense<0.000000e+00> : vector<8xf32>
    %37 = vector.multi_reduction <add>, %36, %cst_32 [1] : vector<8x8xf32> to vector<8xf32>
    %38 = vector.shape_cast %37 : vector<8xf32> to vector<8x1xf32>
    %cst_33 = arith.constant dense<0.000000e+00> : vector<8x8xf32>
    %39 = tpu.matmul %36, %30, %cst_33 {dimension_numbers = #tpu.dot_dimension_numbers<[1], [0], [0], [1], [0, 0, 1, 1], [], []>} : vector<8x8xf32>, vector<8x8xf32>, vector<8x8xf32> -> vector<8x8xf32>
    %40 = tpu.reciprocal %38 {approx = true} : vector<8x1xf32> -> vector<8x1xf32>
    %41 = vector.broadcast %40 : vector<8x1xf32> to vector<8x8xf32>
    %42 = arith.mulf %39, %41 : vector<8x8xf32>
    %c0_34 = arith.constant 0 : index
    %c8_35 = arith.constant 8 : index
    %43 = vector.load %arg12[%c0_34, %c8_35] : memref<8x32xf32, #tpu.memory_space<vmem>>, vector<8x8xf32>
    tpu.vector_store %arg12[%c0_34, %c8_35], %42 {strides = array<i32>} : memref<8x32xf32, #tpu.memory_space<vmem>>, vector<8x8xf32>,
    %44 = vector.extract_strided_slice %11 {offsets = [0, 16], sizes = [8, 8], strides = [1, 1]} : vector<8x32xf32> to vector<8x8xf32>
    %c0_36 = arith.constant 0 : index
    %c16 = arith.constant 16 : index
    %45 = vector.load %arg10[%c0_36, %c16] : memref<8x32xf32, #tpu.memory_space<vmem>>, vector<8x8xf32>
    %c0_37 = arith.constant 0 : index
    %c16_38 = arith.constant 16 : index
    %46 = vector.load %arg11[%c0_37, %c16_38] : memref<8x32xf32, #tpu.memory_space<vmem>>, vector<8x8xf32>
    %cst_39 = arith.constant dense<0.000000e+00> : vector<8x8xf32>
    %47 = tpu.matmul %44, %45, %cst_39 {dimension_numbers = #tpu.dot_dimension_numbers<[1], [1], [0], [0], [0, 0, 1, 0], [], []>} : vector<8x8xf32>, vector<8x8xf32>, vector<8x8xf32> -> vector<8x8xf32>
    %cst_40 = arith.constant dense<0xFF800000> : vector<8xf32>
    %48 = vector.multi_reduction <maximumf>, %47, %cst_40 [1] : vector<8x8xf32> to vector<8xf32>
    %49 = vector.shape_cast %48 : vector<8xf32> to vector<8x1xf32>
    %50 = vector.broadcast %49 : vector<8x1xf32> to vector<8x8xf32>
    %51 = arith.subf %47, %50 : vector<8x8xf32>
    %52 = math.exp %51 : vector<8x8xf32>
    %cst_41 = arith.constant dense<0.000000e+00> : vector<8xf32>
    %53 = vector.multi_reduction <add>, %52, %cst_41 [1] : vector<8x8xf32> to vector<8xf32>
    %54 = vector.shape_cast %53 : vector<8xf32> to vector<8x1xf32>
    %cst_42 = arith.constant dense<0.000000e+00> : vector<8x8xf32>
    %55 = tpu.matmul %52, %46, %cst_42 {dimension_numbers = #tpu.dot_dimension_numbers<[1], [0], [0], [1], [0, 0, 1, 1], [], []>} : vector<8x8xf32>, vector<8x8xf32>, vector<8x8xf32> -> vector<8x8xf32>
    %56 = tpu.reciprocal %54 {approx = true} : vector<8x1xf32> -> vector<8x1xf32>
    %57 = vector.broadcast %56 : vector<8x1xf32> to vector<8x8xf32>
    %58 = arith.mulf %55, %57 : vector<8x8xf32>
    %c0_43 = arith.constant 0 : index
    %c16_44 = arith.constant 16 : index
    %59 = vector.load %arg12[%c0_43, %c16_44] : memref<8x32xf32, #tpu.memory_space<vmem>>, vector<8x8xf32>
    tpu.vector_store %arg12[%c0_43, %c16_44], %58 {strides = array<i32>} : memref<8x32xf32, #tpu.memory_space<vmem>>, vector<8x8xf32>,
    %60 = vector.extract_strided_slice %11 {offsets = [0, 24], sizes = [8, 8], strides = [1, 1]} : vector<8x32xf32> to vector<8x8xf32>
    %c0_45 = arith.constant 0 : index
    %c24 = arith.constant 24 : index
    %61 = vector.load %arg10[%c0_45, %c24] : memref<8x32xf32, #tpu.memory_space<vmem>>, vector<8x8xf32>
    %c0_46 = arith.constant 0 : index
    %c24_47 = arith.constant 24 : index
    %62 = vector.load %arg11[%c0_46, %c24_47] : memref<8x32xf32, #tpu.memory_space<vmem>>, vector<8x8xf32>
    %cst_48 = arith.constant dense<0.000000e+00> : vector<8x8xf32>
    %63 = tpu.matmul %60, %61, %cst_48 {dimension_numbers = #tpu.dot_dimension_numbers<[1], [1], [0], [0], [0, 0, 1, 0], [], []>} : vector<8x8xf32>, vector<8x8xf32>, vector<8x8xf32> -> vector<8x8xf32>
    %cst_49 = arith.constant dense<0xFF800000> : vector<8xf32>
    %64 = vector.multi_reduction <maximumf>, %63, %cst_49 [1] : vector<8x8xf32> to vector<8xf32>
    %65 = vector.shape_cast %64 : vector<8xf32> to vector<8x1xf32>
    %66 = vector.broadcast %65 : vector<8x1xf32> to vector<8x8xf32>
    %67 = arith.subf %63, %66 : vector<8x8xf32>
    %68 = math.exp %67 : vector<8x8xf32>
    %cst_50 = arith.constant dense<0.000000e+00> : vector<8xf32>
    %69 = vector.multi_reduction <add>, %68, %cst_50 [1] : vector<8x8xf32> to vector<8xf32>
    %70 = vector.shape_cast %69 : vector<8xf32> to vector<8x1xf32>
    %cst_51 = arith.constant dense<0.000000e+00> : vector<8x8xf32>
    %71 = tpu.matmul %68, %62, %cst_51 {dimension_numbers = #tpu.dot_dimension_numbers<[1], [0], [0], [1], [0, 0, 1, 1], [], []>} : vector<8x8xf32>, vector<8x8xf32>, vector<8x8xf32> -> vector<8x8xf32>
    %72 = tpu.reciprocal %70 {approx = true} : vector<8x1xf32> -> vector<8x1xf32>
    %73 = vector.broadcast %72 : vector<8x1xf32> to vector<8x8xf32>
    %74 = arith.mulf %71, %73 : vector<8x8xf32>
    %c0_52 = arith.constant 0 : index
    %c24_53 = arith.constant 24 : index
    %75 = vector.load %arg12[%c0_52, %c24_53] : memref<8x32xf32, #tpu.memory_space<vmem>>, vector<8x8xf32>
    tpu.vector_store %arg12[%c0_52, %c24_53], %74 {strides = array<i32>} : memref<8x32xf32, #tpu.memory_space<vmem>>, vector<8x8xf32>,
    %c0_54 = arith.constant 0 : index
    %c0_55 = arith.constant 0 : index
    %76 = vector.load %arg12[%c0_54, %c0_55] : memref<8x32xf32, #tpu.memory_space<vmem>>, vector<8x32xf32>
    %c0_56 = arith.constant 0 : index
    %c0_57 = arith.constant 0 : index
    %77 = vector.load %arg7[%c0_56, %c0_57] : memref<32x32xf32, #tpu.memory_space<vmem>>, vector<32x32xf32>
    %cst_58 = arith.constant dense<0.000000e+00> : vector<8x32xf32>
    %78 = tpu.matmul %76, %77, %cst_58 {dimension_numbers = #tpu.dot_dimension_numbers<[1], [0], [0], [1], [0, 0, 1, 1], [], []>} : vector<8x32xf32>, vector<32x32xf32>, vector<8x32xf32> -> vector<8x32xf32>
    %c0_59 = arith.constant 0 : index
    %c0_60 = arith.constant 0 : index
    %79 = vector.load %arg8[%c0_59, %c0_60] : memref<1x32xf32, #tpu.memory_space<vmem>>, vector<1x32xf32>
    %80 = vector.broadcast %79 : vector<1x32xf32> to vector<8x32xf32>
    %81 = arith.addf %78, %80 : vector<8x32xf32>
    %c0_61 = arith.constant 0 : index
    %c0_62 = arith.constant 0 : index
    %c0_63 = arith.constant 0 : index
    %82 = vector.load %arg9[%c0_61, %c0_62, %c0_63] : memref<1x8x32xf32, #tpu.memory_space<vmem>>, vector<1x8x32xf32>
    %83 = vector.shape_cast %82 : vector<1x8x32xf32> to vector<8x32xf32>
    %84 = vector.shape_cast %81 : vector<8x32xf32> to vector<1x8x32xf32>
    tpu.vector_store %arg9[%c0_61, %c0_62, %c0_63], %84 {strides = array<i32>} : memref<1x8x32xf32, #tpu.memory_space<vmem>>, vector<1x8x32xf32>,
    return
  }
  func.func @transform_0(%arg0: i32, %arg1: i32) -> (i32, i32, i32) {
    %c0_i32 = arith.constant 0 : i32
    %c0_i32_0 = arith.constant 0 : i32
    return %arg0, %arg1, %c0_i32 : i32, i32, i32
  }
  func.func @transform_1(%arg0: i32, %arg1: i32) -> (i32, i32, i32) {
    %c0_i32 = arith.constant 0 : i32
    %c0_i32_0 = arith.constant 0 : i32
    %c0_i32_1 = arith.constant 0 : i32
    return %arg0, %c0_i32, %c0_i32_0 : i32, i32, i32
  }
  func.func @transform_2(%arg0: i32, %arg1: i32) -> (i32, i32) {
    %c0_i32 = arith.constant 0 : i32
    %c0_i32_0 = arith.constant 0 : i32
    %c0_i32_1 = arith.constant 0 : i32
    return %c0_i32, %c0_i32_0 : i32, i32
  }
  func.func @transform_3(%arg0: i32, %arg1: i32) -> (i32, i32) {
    %c0_i32 = arith.constant 0 : i32
    %c0_i32_0 = arith.constant 0 : i32
    %c0_i32_1 = arith.constant 0 : i32
    return %c0_i32, %c0_i32_0 : i32, i32
  }
  func.func @transform_4(%arg0: i32, %arg1: i32) -> (i32, i32) {
    %c0_i32 = arith.constant 0 : i32
    %c0_i32_0 = arith.constant 0 : i32
    %c0_i32_1 = arith.constant 0 : i32
    return %c0_i32, %c0_i32_0 : i32, i32
  }
  func.func @transform_5(%arg0: i32, %arg1: i32) -> (i32, i32) {
    %c0_i32 = arith.constant 0 : i32
    %c0_i32_0 = arith.constant 0 : i32
    %c0_i32_1 = arith.constant 0 : i32
    return %c0_i32, %c0_i32_0 : i32, i32
  }
  func.func @transform_6(%arg0: i32, %arg1: i32) -> (i32, i32) {
    %c0_i32 = arith.constant 0 : i32
    %c0_i32_0 = arith.constant 0 : i32
    %c0_i32_1 = arith.constant 0 : i32
    return %c0_i32, %c0_i32_0 : i32, i32
  }
  func.func @transform_7(%arg0: i32, %arg1: i32) -> (i32, i32, i32) {
    %c0_i32 = arith.constant 0 : i32
    %c0_i32_0 = arith.constant 0 : i32
    return %arg0, %arg1, %c0_i32 : i32, i32, i32
  }
}

</mosaic_0001>

<llo_original>
// kernel: tpu_custom_call.1
$region0: #{tpu_custom_call.1}
  #allocation0 [shape = 'u32[]', space=smem, size = 0x4, offset = 0x4, fixed_abs, tag = 'smem constant byte address 0x4 - core index']
  #allocation1 [shape = 'u32[144,128]{1,0:T(1,128)}', space=vmem, size = 0x12000, scoped, tag = 'internal scratch']
  #allocation2 [shape = 'f32[8,32]{1,0:T(8,128)}', space=vmem, size = 0x1000, scoped, tag = 'scratch operand']
  #allocation3 [shape = 'f32[8,32]{1,0:T(8,128)}', space=vmem, size = 0x1000, scoped, tag = 'scratch operand']
  #allocation4 [shape = 'f32[8,32]{1,0:T(8,128)}', space=vmem, size = 0x1000, scoped, tag = 'scratch operand']
  %s0 = inlined_call_operand.hbm [shape: f32[2,8,32], index: 0, kind: input, shape index: {}]
  %s1 = inlined_call_operand.hbm [shape: f32[2,8,32], index: 1, kind: input, shape index: {}]
  %s2 = inlined_call_operand.hbm [shape: f32[32,32], index: 2, kind: input, shape index: {}]
  %s3 = inlined_call_operand.hbm [shape: f32[32,32], index: 3, kind: input, shape index: {}]
  %s4 = inlined_call_operand.hbm [shape: f32[32,32], index: 4, kind: input, shape index: {}]
  %s5 = inlined_call_operand.hbm [shape: f32[32,32], index: 5, kind: input, shape index: {}]
  %s6 = inlined_call_operand.vmem [shape: f32[1,32], index: 6, kind: input, shape index: {}]
  %s7 = inlined_call_operand.hbm [shape: f32[2,8,32], index: 7, kind: output, shape index: {}]
  %s8 = sld [smem:[#allocation0]]
  $region85: #{tpu_custom_call.1} parent=0
    _
  %s10 = ssub.s32 1, %s8
  %s11 = scalar_select 0, %s10, %s8
  $region1: #{tpu_custom_call.1} parent=0
    #allocation5 [shape = 'u8[8192]{0}', space=vmem, size = 0x2000, scoped, tag = 'input window, operand 0']
    #allocation6 [shape = 's32[2]{0}', space=sflag, size = 0x8, scoped, tag = 'scoped memory for tpu_custom_call.1']
    #allocation7 [shape = 's32[2]{0}', space=sflag, size = 0x8, scoped, tag = 'scoped memory for tpu_custom_call.1']
    #allocation8 [shape = 'u8[8192]{0}', space=vmem, size = 0x2000, scoped, tag = 'input window, operand 1']
    #allocation9 [shape = 's32[2]{0}', space=sflag, size = 0x8, scoped, tag = 'scoped memory for tpu_custom_call.1']
    #allocation10 [shape = 'u8[16384]{0}', space=vmem, size = 0x4000, scoped, tag = 'input window, operand 2, single buffered']
    #allocation11 [shape = 'u8[16384]{0}', space=vmem, size = 0x4000, scoped, tag = 'input window, operand 3, single buffered']
    #allocation12 [shape = 's32[1]{0}', space=sflag, size = 0x4, scoped, tag = 'scoped memory for tpu_custom_call.1']
    #allocation13 [shape = 'u8[16384]{0}', space=vmem, size = 0x4000, scoped, tag = 'input window, operand 4, single buffered']
    #allocation14 [shape = 'u8[16384]{0}', space=vmem, size = 0x4000, scoped, tag = 'input window, operand 5, single buffered']
    #allocation15 [shape = 's32[1]{0}', space=sflag, size = 0x4, scoped, tag = 'scoped memory for tpu_custom_call.1']
    #allocation16 [shape = 'u8[8192]{0}', space=vmem, size = 0x2000, scoped, tag = 'output window, operand 0']
    %12 = vsyncpa [#allocation6], 0
    %s13 = scalar_lea.sflag [#allocation6], 1
    %14 = vsyncpa %s13, 0
    %15 = vsyncpa [#allocation9], 0
    %s16 = scalar_lea.sflag [#allocation9], 1
    %17 = vsyncpa %s16, 0
    %18 = vsyncpa [#allocation12], 0
    %19 = vsyncpa [#allocation15], 0
    %20 = vsyncpa [#allocation7], 0
    %s21 = scalar_lea.sflag [#allocation7], 1
    %22 = vsyncpa %s21, 0
    loop: start=0, step=1, limit=4
    $region2: #{tpu_custom_call.1} parent=1 // loop_pre_header
      _
    $region3: #{tpu_custom_call.1} parent=1 // loop_header
      %s24 = sphi 0, %s28
      %p25 = scmp.ge.s32.totalorder %s24, 4
      %s31 = sphi 0, %s43
      %s32 = sphi 0, %s39
      %s33 = sphi 0, %s31
      %s34 = sphi 0, %s32
      %s35 = sphi 0, %s33
      %s36 = sphi 0, %s34
      %s48 = sphi 0, %s50
      %s51 = sphi 0, %s48
      %s52 = sphi 0, %s51
      %s68 = sphi 0, %s52
      %s74 = sphi 0, %s76
      %s77 = sphi 0, %s74
      %s78 = sphi 0, %s77
      %s94 = sphi 0, %s78
      %s98 = sphi 0, %s98
      %s100 = sphi 0, %s98
      %s101 = sphi 0, %s100
      %s115 = sphi 0, %s101
      %s119 = sphi 0, %s119
      %s121 = sphi 0, %s119
      %s122 = sphi 0, %s121
      %s136 = sphi 0, %s122
      %s140 = sphi 0, %s140
      %s142 = sphi 0, %s140
      %s143 = sphi 0, %s142
      %s157 = sphi 0, %s143
      %s161 = sphi 0, %s161
      %s163 = sphi 0, %s161
      %s164 = sphi 0, %s163
      %s178 = sphi 0, %s164
      %s182 = sphi 0, %s182
      %s184 = sphi 0, %s182
      %s185 = sphi 0, %s184
      %s199 = sphi 0, %s185
      %s207 = sphi 0, %s209
      %s210 = sphi 0, %s207
      %s211 = sphi 0, %s210
      %s227 = sphi 0, %s211
    $region4: #{tpu_custom_call.1} parent=1 // loop_header_branch
      %27 = sbr.rel (%p25) target = $region8
    $region5: #{tpu_custom_call.1} parent=1 // loop_body
      %s29 = ssub.s32 %s24, 1
      %s30 = ssub.s32 %s24, 2
      %s37 = sadd.s32 1, %s32
      %p38 = scmp.ge.s32.totalorder %s37, 1
      %s39 = scalar_select %p38, 0, %s37
      %s40 = sadd.s32 1, %s31
      %s41 = scalar_select %p38, %s40, %s31
      %p42 = scmp.ge.s32.totalorder %s41, 2
      %s43 = scalar_select %p42, 0, %s41
      %s44 = ssub.s32 %s31, %s43
      %s45 = ssub.s32 %s32, %s39
      %s46 = sor.u32 %s44, %s45
      %p47 = scmp.eq.s32.totalorder %s46, 0
      %s49 = sadd.s32 %s48, 1
      %s50 = scalar_select %p47, %s48, %s49
      %p53 = pneg %p47
      %p54 = scmp.eq.s32.totalorder %s24, 1
      %p55 = por %p53, %p54
      %p56 = scmp.ne.s32.totalorder %s48, %s51
      %p57 = scmp.eq.s32.totalorder %s24, 0
      %p58 = por %p56, %p57
      %p59 = scmp.ne.s32.totalorder %s48, %s51
      %p60 = scmp.eq.s32.totalorder %s29, 1
      %p61 = por %p59, %p60
      %p62 = scmp.ne.s32.totalorder %s51, %s52
      %p63 = scmp.eq.s32.totalorder %s29, 0
      %p64 = por %p62, %p63
      %p65 = scmp.ne.s32.totalorder %s51, %s52
      %p66 = scmp.eq.s32.totalorder %s30, 1
      %p67 = por %p65, %p66
      %p69 = scmp.ne.s32.totalorder %s52, %s68
      %p70 = scmp.eq.s32.totalorder %s30, 0
      %p71 = por %p69, %p70
      %s72 = ssub.s32 %s31, %s43
      %p73 = scmp.eq.s32.totalorder %s72, 0
      %s75 = sadd.s32 %s74, 1
      %s76 = scalar_select %p73, %s74, %s75
      %p79 = pneg %p73
      %p80 = scmp.eq.s32.totalorder %s24, 1
      %p81 = por %p79, %p80
      %p82 = scmp.ne.s32.totalorder %s74, %s77
      %p83 = scmp.eq.s32.totalorder %s24, 0
      %p84 = por %p82, %p83
      %p85 = scmp.ne.s32.totalorder %s74, %s77
      %p86 = scmp.eq.s32.totalorder %s29, 1
      %p87 = por %p85, %p86
      %p88 = scmp.ne.s32.totalorder %s77, %s78
      %p89 = scmp.eq.s32.totalorder %s29, 0
      %p90 = por %p88, %p89
      %p91 = scmp.ne.s32.totalorder %s77, %s78
      %p92 = scmp.eq.s32.totalorder %s30, 1
      %p93 = por %p91, %p92
      %p95 = scmp.ne.s32.totalorder %s78, %s94
      %p96 = scmp.eq.s32.totalorder %s30, 0
      %p97 = por %p95, %p96
      %s99 = sadd.s32 %s98, 1
      %p102 = scmp.eq.s32.totalorder %s24, 1
      %p103 = scmp.ne.s32.totalorder %s98, %s100
      %p104 = scmp.eq.s32.totalorder %s24, 0
      %p105 = por %p103, %p104
      %p106 = scmp.ne.s32.totalorder %s98, %s100
      %p107 = scmp.eq.s32.totalorder %s29, 1
      %p108 = por %p106, %p107
      %p109 = scmp.ne.s32.totalorder %s100, %s101
      %p110 = scmp.eq.s32.totalorder %s29, 0
      %p111 = por %p109, %p110
      %p112 = scmp.ne.s32.totalorder %s100, %s101
      %p113 = scmp.eq.s32.totalorder %s30, 1
      %p114 = por %p112, %p113
      %p116 = scmp.ne.s32.totalorder %s101, %s115
      %p117 = scmp.eq.s32.totalorder %s30, 0
      %p118 = por %p116, %p117
      %s120 = sadd.s32 %s119, 1
      %p123 = scmp.eq.s32.totalorder %s24, 1
      %p124 = scmp.ne.s32.totalorder %s119, %s121
      %p125 = scmp.eq.s32.totalorder %s24, 0
      %p126 = por %p124, %p125
      %p127 = scmp.ne.s32.totalorder %s119, %s121
      %p128 = scmp.eq.s32.totalorder %s29, 1
      %p129 = por %p127, %p128
      %p130 = scmp.ne.s32.totalorder %s121, %s122
      %p131 = scmp.eq.s32.totalorder %s29, 0
      %p132 = por %p130, %p131
      %p133 = scmp.ne.s32.totalorder %s121, %s122
      %p134 = scmp.eq.s32.totalorder %s30, 1
      %p135 = por %p133, %p134
      %p137 = scmp.ne.s32.totalorder %s122, %s136
      %p138 = scmp.eq.s32.totalorder %s30, 0
      %p139 = por %p137, %p138
      %s141 = sadd.s32 %s140, 1
      %p144 = scmp.eq.s32.totalorder %s24, 1
      %p145 = scmp.ne.s32.totalorder %s140, %s142
      %p146 = scmp.eq.s32.totalorder %s24, 0
      %p147 = por %p145, %p146
      %p148 = scmp.ne.s32.totalorder %s140, %s142
      %p149 = scmp.eq.s32.totalorder %s29, 1
      %p150 = por %p148, %p149
      %p151 = scmp.ne.s32.totalorder %s142, %s143
      %p152 = scmp.eq.s32.totalorder %s29, 0
      %p153 = por %p151, %p152
      %p154 = scmp.ne.s32.totalorder %s142, %s143
      %p155 = scmp.eq.s32.totalorder %s30, 1
      %p156 = por %p154, %p155
      %p158 = scmp.ne.s32.totalorder %s143, %s157
      %p159 = scmp.eq.s32.totalorder %s30, 0
      %p160 = por %p158, %p159
      %s162 = sadd.s32 %s161, 1
      %p165 = scmp.eq.s32.totalorder %s24, 1
      %p166 = scmp.ne.s32.totalorder %s161, %s163
      %p167 = scmp.eq.s32.totalorder %s24, 0
      %p168 = por %p166, %p167
      %p169 = scmp.ne.s32.totalorder %s161, %s163
      %p170 = scmp.eq.s32.totalorder %s29, 1
      %p171 = por %p169, %p170
      %p172 = scmp.ne.s32.totalorder %s163, %s164
      %p173 = scmp.eq.s32.totalorder %s29, 0
      %p174 = por %p172, %p173
      %p175 = scmp.ne.s32.totalorder %s163, %s164
      %p176 = scmp.eq.s32.totalorder %s30, 1
      %p177 = por %p175, %p176
      %p179 = scmp.ne.s32.totalorder %s164, %s178
      %p180 = scmp.eq.s32.totalorder %s30, 0
      %p181 = por %p179, %p180
      %s183 = sadd.s32 %s182, 1
      %p186 = scmp.eq.s32.totalorder %s24, 1
      %p187 = scmp.ne.s32.totalorder %s182, %s184
      %p188 = scmp.eq.s32.totalorder %s24, 0
      %p189 = por %p187, %p188
      %p190 = scmp.ne.s32.totalorder %s182, %s184
      %p191 = scmp.eq.s32.totalorder %s29, 1
      %p192 = por %p190, %p191
      %p193 = scmp.ne.s32.totalorder %s184, %s185
      %p194 = scmp.eq.s32.totalorder %s29, 0
      %p195 = por %p193, %p194
      %p196 = scmp.ne.s32.totalorder %s184, %s185
      %p197 = scmp.eq.s32.totalorder %s30, 1
      %p198 = por %p196, %p197
      %p200 = scmp.ne.s32.totalorder %s185, %s199
      %p201 = scmp.eq.s32.totalorder %s30, 0
      %p202 = por %p200, %p201
      %s203 = ssub.s32 %s31, %s43
      %s204 = ssub.s32 %s32, %s39
      %s205 = sor.u32 %s203, %s204
      %p206 = scmp.eq.s32.totalorder %s205, 0
      %s208 = sadd.s32 %s207, 1
      %s209 = scalar_select %p206, %s207, %s208
      %p212 = pneg %p206
      %p213 = scmp.eq.s32.totalorder %s24, 1
      %p214 = por %p212, %p213
      %p215 = scmp.ne.s32.totalorder %s207, %s210
      %p216 = scmp.eq.s32.totalorder %s24, 0
      %p217 = por %p215, %p216
      %p218 = scmp.ne.s32.totalorder %s207, %s210
      %p219 = scmp.eq.s32.totalorder %s29, 1
      %p220 = por %p218, %p219
      %p221 = scmp.ne.s32.totalorder %s210, %s211
      %p222 = scmp.eq.s32.totalorder %s29, 0
      %p223 = por %p221, %p222
      %p224 = scmp.ne.s32.totalorder %s210, %s211
      %p225 = scmp.eq.s32.totalorder %s30, 1
      %p226 = por %p224, %p225
      %p228 = scmp.ne.s32.totalorder %s211, %s227
      %p229 = scmp.eq.s32.totalorder %s30, 0
      %p230 = por %p228, %p229
      %p231 = scmp.le.s32.totalorder 1, %s24
      %p232 = scmp.lt.s32.totalorder %s24, 3
      %p233 = pnand %p231, %p232
      %p234 = pneg %p233
      // Predicated region
      $region9: #{tpu_custom_call.1} parent=5 // pred_check
        _
      $region10: #{tpu_custom_call.1} parent=5 // pred_check_branch
        %236 = sbr.rel (%p233) target = $region12
      $region11: #{tpu_custom_call.1} parent=5 // pred_region
        %s237 = ssub.s32 %s24, 1
        // Predicated region
        $region13: #{tpu_custom_call.1} parent=11 // pred_check
          %p238 = pneg %p111
        $region14: #{tpu_custom_call.1} parent=11 // pred_check_branch
          %240 = sbr.rel (%p238) target = $region16
        $region15: #{tpu_custom_call.1} parent=11 // pred_region
          %s242 = ssub.s32 512, 512
          %243 = vsyncadd [#allocation9], %s242
          %s244 = sshll.u32 [#allocation10], 4
          %s245 = int_to_ptr.vmem [resolvable:$true] %s244
          %250 = dma.hbm_to_vmem [thread:$0]  %s2, 512, %s245, [#allocation9], 128, 128, 8
        $region16: #{tpu_custom_call.1} parent=11 // pred_fallthru
          _
        // Predicated region
        $region17: #{tpu_custom_call.1} parent=11 // pred_check
          %p251 = pneg %p132
        $region18: #{tpu_custom_call.1} parent=11 // pred_check_branch
          %253 = sbr.rel (%p251) target = $region20
        $region19: #{tpu_custom_call.1} parent=11 // pred_region
          %s255 = ssub.s32 512, 512
          %256 = vsyncadd [#allocation12], %s255
          %s257 = sshll.u32 [#allocation11], 4
          %s258 = int_to_ptr.vmem [resolvable:$true] %s257
          %263 = dma.hbm_to_vmem [thread:$0]  %s3, 512, %s258, [#allocation12], 128, 128, 8
        $region20: #{tpu_custom_call.1} parent=11 // pred_fallthru
          _
        // Predicated region
        $region21: #{tpu_custom_call.1} parent=11 // pred_check
          %p264 = pneg %p153
        $region22: #{tpu_custom_call.1} parent=11 // pred_check_branch
          %266 = sbr.rel (%p264) target = $region24
        $region23: #{tpu_custom_call.1} parent=11 // pred_region
          %s268 = ssub.s32 512, 512
          %269 = vsyncadd [#allocation12], %s268
          %s270 = sshll.u32 [#allocation13], 4
          %s271 = int_to_ptr.vmem [resolvable:$true] %s270
          %276 = dma.hbm_to_vmem [thread:$0]  %s4, 512, %s271, [#allocation12], 128, 128, 8
        $region24: #{tpu_custom_call.1} parent=11 // pred_fallthru
          _
        // Predicated region
        $region25: #{tpu_custom_call.1} parent=11 // pred_check
          %p277 = pneg %p174
        $region26: #{tpu_custom_call.1} parent=11 // pred_check_branch
          %279 = sbr.rel (%p277) target = $region28
        $region27: #{tpu_custom_call.1} parent=11 // pred_region
          %s281 = ssub.s32 512, 512
          %282 = vsyncadd [#allocation15], %s281
          %s283 = sshll.u32 [#allocation14], 4
          %s284 = int_to_ptr.vmem [resolvable:$true] %s283
          %289 = dma.hbm_to_vmem [thread:$0]  %s5, 512, %s284, [#allocation15], 128, 128, 8
        $region28: #{tpu_custom_call.1} parent=11 // pred_fallthru
          _
        // Predicated region
        $region29: #{tpu_custom_call.1} parent=11 // pred_check
          %p290 = pneg %p195
        $region30: #{tpu_custom_call.1} parent=11 // pred_check_branch
          %292 = sbr.rel (%p290) target = $region32
        $region31: #{tpu_custom_call.1} parent=11 // pred_region
          _
        $region32: #{tpu_custom_call.1} parent=11 // pred_fallthru
          _
      $region12: #{tpu_custom_call.1} parent=5 // pred_fallthru
        _
      %p293 = scmp.lt.s32.totalorder %s24, 2
      // Predicated region
      $region33: #{tpu_custom_call.1} parent=5 // pred_check
        %p294 = pneg %p293
      $region34: #{tpu_custom_call.1} parent=5 // pred_check_branch
        %296 = sbr.rel (%p294) target = $region36
      $region35: #{tpu_custom_call.1} parent=5 // pred_region
        // Predicated region
        $region37: #{tpu_custom_call.1} parent=35 // pred_check
          %p297 = pneg %p58
        $region38: #{tpu_custom_call.1} parent=35 // pred_check_branch
          %299 = sbr.rel (%p297) target = $region40
        $region39: #{tpu_custom_call.1} parent=35 // pred_region
          %s300 = sand.u32 %s48, 1
          %s301 = scalar_lea.sflag [#allocation6], %s300
          %s302 = sand.u32 %s48, 1
          %s303 = smul.addr %s302, 8
          %s304 = scalar_lea.vmem [#allocation5], %s303
          %s306 = ssub.s32 128, 128
          %307 = vsyncadd %s301, %s306
          %s308 = sadd.s32 %s32, %s31
          %s309 = smul.addr %s308, 128
          %s310 = scalar_lea.hbm %s0, %s309
          %s312 = sshll.u32 %s304, 4
          %s313 = int_to_ptr.vmem [resolvable:$true] %s312
          %315 = dma.hbm_to_vmem [thread:$0]  %s310, 128, %s313, %s301
        $region40: #{tpu_custom_call.1} parent=35 // pred_fallthru
          _
        // Predicated region
        $region41: #{tpu_custom_call.1} parent=35 // pred_check
          %p316 = pneg %p84
        $region42: #{tpu_custom_call.1} parent=35 // pred_check_branch
          %318 = sbr.rel (%p316) target = $region44
        $region43: #{tpu_custom_call.1} parent=35 // pred_region
          %s319 = sand.u32 %s24, 1
          %s320 = scalar_lea.sflag [#allocation9], %s319
          %s321 = sand.u32 %s74, 1
          %s322 = smul.addr %s321, 8
          %s323 = scalar_lea.vmem [#allocation8], %s322
          %s325 = ssub.s32 128, 128
          %326 = vsyncadd %s320, %s325
          %s327 = smul.addr %s31, 128
          %s328 = scalar_lea.hbm %s1, %s327
          %s330 = sshll.u32 %s323, 4
          %s331 = int_to_ptr.vmem [resolvable:$true] %s330
          %333 = dma.hbm_to_vmem [thread:$0]  %s328, 128, %s331, %s320
        $region44: #{tpu_custom_call.1} parent=35 // pred_fallthru
          _
      $region36: #{tpu_custom_call.1} parent=5 // pred_fallthru
        _
      %p334 = scmp.le.s32.totalorder 1, %s24
      %p335 = scmp.lt.s32.totalorder %s24, 3
      %p336 = pnand %p334, %p335
      %p337 = pneg %p336
      // Predicated region
      $region45: #{tpu_custom_call.1} parent=5 // pred_check
        _
      $region46: #{tpu_custom_call.1} parent=5 // pred_check_branch
        %339 = sbr.rel (%p336) target = $region48
      $region47: #{tpu_custom_call.1} parent=5 // pred_region
        %s340 = ssub.s32 %s24, 1
        %s341 = sand.u32 %s51, 1
        %s342 = scalar_lea.sflag [#allocation6], %s341
        %s343 = sand.u32 %s51, 1
        %s344 = smul.addr %s343, 8
        %s345 = scalar_lea.vmem [#allocation5], %s344
        // Predicated region
        $region49: #{tpu_custom_call.1} parent=47 // pred_check
          %p346 = pneg %p64
        $region50: #{tpu_custom_call.1} parent=47 // pred_check_branch
          %348 = sbr.rel (%p346) target = $region52
        $region51: #{tpu_custom_call.1} parent=47 // pred_region
          %349 = dma.done %s342, 128
        $region52: #{tpu_custom_call.1} parent=47 // pred_fallthru
          _
        %s350 = sand.u32 %s29, 1
        %s351 = scalar_lea.sflag [#allocation9], %s350
        %s352 = sand.u32 %s77, 1
        %s353 = smul.addr %s352, 8
        %s354 = scalar_lea.vmem [#allocation8], %s353
        // Predicated region
        $region53: #{tpu_custom_call.1} parent=47 // pred_check
          %p355 = pneg %p90
        $region54: #{tpu_custom_call.1} parent=47 // pred_check_branch
          %357 = sbr.rel (%p355) target = $region56
        $region55: #{tpu_custom_call.1} parent=47 // pred_region
          %358 = dma.done %s351, 128
        $region56: #{tpu_custom_call.1} parent=47 // pred_fallthru
          _
        // Predicated region
        $region57: #{tpu_custom_call.1} parent=47 // pred_check
          %p359 = pneg %p111
        $region58: #{tpu_custom_call.1} parent=47 // pred_check_branch
          %361 = sbr.rel (%p359) target = $region60
        $region59: #{tpu_custom_call.1} parent=47 // pred_region
          %362 = dma.done [#allocation9], 512
        $region60: #{tpu_custom_call.1} parent=47 // pred_fallthru
          _
        // Predicated region
        $region61: #{tpu_custom_call.1} parent=47 // pred_check
          %p363 = pneg %p132
        $region62: #{tpu_custom_call.1} parent=47 // pred_check_branch
          %365 = sbr.rel (%p363) target = $region64
        $region63: #{tpu_custom_call.1} parent=47 // pred_region
          %366 = dma.done [#allocation12], 512
        $region64: #{tpu_custom_call.1} parent=47 // pred_fallthru
          _
        // Predicated region
        $region65: #{tpu_custom_call.1} parent=47 // pred_check
          %p367 = pneg %p153
        $region66: #{tpu_custom_call.1} parent=47 // pred_check_branch
          %369 = sbr.rel (%p367) target = $region68
        $region67: #{tpu_custom_call.1} parent=47 // pred_region
          %370 = dma.done [#allocation12], 512
        $region68: #{tpu_custom_call.1} parent=47 // pred_fallthru
          _
        // Predicated region
        $region69: #{tpu_custom_call.1} parent=47 // pred_check
          %p371 = pneg %p174
        $region70: #{tpu_custom_call.1} parent=47 // pred_check_branch
          %373 = sbr.rel (%p371) target = $region72
        $region71: #{tpu_custom_call.1} parent=47 // pred_region
          %374 = dma.done [#allocation15], 512
        $region72: #{tpu_custom_call.1} parent=47 // pred_fallthru
          _
        %s375 = sand.u32 %s51, 1
        %s376 = scalar_lea.sflag [#allocation6], %s375
        %s377 = sand.u32 %s51, 1
        %s378 = smul.addr %s377, 8
        %s379 = scalar_lea.vmem [#allocation5], %s378
        %p380 = pneg %p64
        %p381 = pneg %p61
        %s382 = sand.u32 %s29, 1
        %s383 = scalar_lea.sflag [#allocation9], %s382
        %s384 = sand.u32 %s77, 1
        %s385 = smul.addr %s384, 8
        %s386 = scalar_lea.vmem [#allocation8], %s385
        %p387 = pneg %p90
        %p388 = pneg %p87
        %p389 = pneg %p111
        %p390 = pneg %p108
        %p391 = pneg %p132
        %p392 = pneg %p129
        %p393 = pneg %p153
        %p394 = pneg %p150
        %p395 = pneg %p174
        %p396 = pneg %p171
        %p397 = pneg %p195
        %p398 = pneg %p192
        %p399 = pneg %p223
        %p400 = pneg %p220
        %s401 = sand.u32 %s210, 1
        %s402 = scalar_lea.sflag [#allocation7], %s401
        %s403 = sand.u32 %s210, 1
        %s404 = smul.addr %s403, 8
        %s405 = scalar_lea.vmem [#allocation16], %s404
        %v406 = vld [vmem:[%s354] sm:$0xff]
        %v407 = vld [vmem:[#allocation11] sm:$0xff]
        %v408 = vld [vmem:[#allocation11 + $0x8] sm:$0xff]
        %v409 = vld [vmem:[#allocation11 + $0x10] sm:$0xff]
        %v410 = vld [vmem:[#allocation11 + $0x18] sm:$0xff]
        %vm411 = vcmask 261120
        %v413 = vsel %vm411, %v406, 0
        %415 = vmatprep.subr.mxu0 0.0
        %416 = vmatpush1.msra.mxu0 %v407
        %417 = vmatprep.subr.mxu0 0.0
        %418 = vmatpush1.msra.mxu0 %v408
        %419 = vmatprep.subr.mxu0 0.0
        %420 = vmatpush1.msra.mxu0 %v409
        %421 = vmatprep.subr.mxu0 0.0
        %422 = vmatpush1.msra.mxu0 %v410
        %423 = vmatprep.subr.mxu0 0.0
        %424 = vmatpush1.msra.mxu0 0.0
        %425 = vmatprep.subr.mxu0 0.0
        %426 = vmatpush1.msra.mxu0 0.0
        %427 = vmatprep.subr.mxu0 0.0
        %428 = vmatpush1.msra.mxu0 0.0
        %429 = vmatprep.subr.mxu0 0.0
        %430 = vmatpush1.msra.mxu0 0.0
        %431 = vmatprep.subr.mxu0 0.0
        %432 = vmatpush1.msra.mxu0 0.0
        %433 = vmatprep.subr.mxu0 0.0
        %434 = vmatpush1.msra.mxu0 0.0
        %435 = vmatprep.subr.mxu0 0.0
        %436 = vmatpush1.msra.mxu0 0.0
        %437 = vmatprep.subr.mxu0 0.0
        %438 = vmatpush1.msra.mxu0 0.0
        %439 = vmatprep.subr.mxu0 0.0
        %440 = vmatpush1.msra.mxu0 0.0
        %441 = vmatprep.subr.mxu0 0.0
        %442 = vmatpush1.msra.mxu0 0.0
        %443 = vmatprep.subr.mxu0 0.0
        %444 = vmatpush1.msra.mxu0 0.0
        %445 = vmatprep.subr.mxu0 0.0
        %446 = vmatpush1.msra.mxu0 0.0
        %447 = vmatprep.subr.mxu0 0.0
        %448 = vmatpush1.msra.mxu0 0.0
        %449 = vmatprep.subr.mxu0 0.0
        %450 = vmatpush1.msra.mxu0 0.0
        %451 = vmatprep.subr.mxu0 0.0
        %452 = vmatpush1.msra.mxu0 0.0
        %453 = vmatprep.subr.mxu0 0.0
        %454 = vmatpush1.msra.mxu0 0.0
        %455 = vmatprep.subr.mxu0 0.0
        %456 = vmatpush1.msra.mxu0 0.0
        %457 = vmatprep.subr.mxu0 0.0
        %458 = vmatpush1.msra.mxu0 0.0
        %459 = vmatprep.subr.mxu0 0.0
        %460 = vmatpush1.msra.mxu0 0.0
        %461 = vmatprep.subr.mxu0 0.0
        %462 = vmatpush1.msra.mxu0 0.0
        %463 = vmatprep.subr.mxu0 0.0
        %464 = vmatpush1.msra.mxu0 0.0
        %465 = vmatprep.subr.mxu0 0.0
        %466 = vmatpush1.msra.mxu0 0.0
        %467 = vmatprep.subr.mxu0 0.0
        %468 = vmatpush1.msra.mxu0 0.0
        %469 = vmatprep.subr.mxu0 0.0
        %470 = vmatpush1.msra.mxu0 0.0
        %471 = vmatprep.subr.mxu0 0.0
        %472 = vmatpush1.msra.mxu0 0.0
        %473 = vmatprep.subr.mxu0 0.0
        %474 = vmatpush1.msra.mxu0 0.0
        %475 = vmatprep.subr.mxu0 0.0
        %476 = vmatpush1.msra.mxu0 0.0
        %477 = vmatprep.subr.mxu0 0.0
        %478 = vmatpush1.msra.mxu0 0.0
        %479 = vmatprep.mubr.f32.mxu0 0.0
        %480 = vmatmul.mubr.f32.gmra.mrb[0].mxu0 %v413
        %v481 = vpop.f32.mrb[0].mxu0
        %v482 = vadd.f32 0.0, %v481
        %v483 = vpop.f32.mrb[0].mxu0
        %484 = vdwg.mxu0
        %485 = vst.msk [vmem:[#allocation2] sm:$0xff] %vm411, %v482
        %v486 = vld [vmem:[#allocation13] sm:$0xff]
        %v487 = vld [vmem:[#allocation13 + $0x8] sm:$0xff]
        %v488 = vld [vmem:[#allocation13 + $0x10] sm:$0xff]
        %v489 = vld [vmem:[#allocation13 + $0x18] sm:$0xff]
        %490 = vmatprep.subr.mxu0 0.0
        %491 = vmatpush1.msra.mxu0 %v486
        %492 = vmatprep.subr.mxu0 0.0
        %493 = vmatpush1.msra.mxu0 %v487
        %494 = vmatprep.subr.mxu0 0.0
        %495 = vmatpush1.msra.mxu0 %v488
        %496 = vmatprep.subr.mxu0 0.0
        %497 = vmatpush1.msra.mxu0 %v489
        %498 = vmatprep.subr.mxu0 0.0
        %499 = vmatpush1.msra.mxu0 0.0
        %500 = vmatprep.subr.mxu0 0.0
        %501 = vmatpush1.msra.mxu0 0.0
        %502 = vmatprep.subr.mxu0 0.0
        %503 = vmatpush1.msra.mxu0 0.0
        %504 = vmatprep.subr.mxu0 0.0
        %505 = vmatpush1.msra.mxu0 0.0
        %506 = vmatprep.subr.mxu0 0.0
        %507 = vmatpush1.msra.mxu0 0.0
        %508 = vmatprep.subr.mxu0 0.0
        %509 = vmatpush1.msra.mxu0 0.0
        %510 = vmatprep.subr.mxu0 0.0
        %511 = vmatpush1.msra.mxu0 0.0
        %512 = vmatprep.subr.mxu0 0.0
        %513 = vmatpush1.msra.mxu0 0.0
        %514 = vmatprep.subr.mxu0 0.0
        %515 = vmatpush1.msra.mxu0 0.0
        %516 = vmatprep.subr.mxu0 0.0
        %517 = vmatpush1.msra.mxu0 0.0
        %518 = vmatprep.subr.mxu0 0.0
        %519 = vmatpush1.msra.mxu0 0.0
        %520 = vmatprep.subr.mxu0 0.0
        %521 = vmatpush1.msra.mxu0 0.0
        %522 = vmatprep.subr.mxu0 0.0
        %523 = vmatpush1.msra.mxu0 0.0
        %524 = vmatprep.subr.mxu0 0.0
        %525 = vmatpush1.msra.mxu0 0.0
        %526 = vmatprep.subr.mxu0 0.0
        %527 = vmatpush1.msra.mxu0 0.0
        %528 = vmatprep.subr.mxu0 0.0
        %529 = vmatpush1.msra.mxu0 0.0
        %530 = vmatprep.subr.mxu0 0.0
        %531 = vmatpush1.msra.mxu0 0.0
        %532 = vmatprep.subr.mxu0 0.0
        %533 = vmatpush1.msra.mxu0 0.0
        %534 = vmatprep.subr.mxu0 0.0
        %535 = vmatpush1.msra.mxu0 0.0
        %536 = vmatprep.subr.mxu0 0.0
        %537 = vmatpush1.msra.mxu0 0.0
        %538 = vmatprep.subr.mxu0 0.0
        %539 = vmatpush1.msra.mxu0 0.0
        %540 = vmatprep.subr.mxu0 0.0
        %541 = vmatpush1.msra.mxu0 0.0
        %542 = vmatprep.subr.mxu0 0.0
        %543 = vmatpush1.msra.mxu0 0.0
        %544 = vmatprep.subr.mxu0 0.0
        %545 = vmatpush1.msra.mxu0 0.0
        %546 = vmatprep.subr.mxu0 0.0
        %547 = vmatpush1.msra.mxu0 0.0
        %548 = vmatprep.subr.mxu0 0.0
        %549 = vmatpush1.msra.mxu0 0.0
        %550 = vmatprep.subr.mxu0 0.0
        %551 = vmatpush1.msra.mxu0 0.0
        %552 = vmatprep.subr.mxu0 0.0
        %553 = vmatpush1.msra.mxu0 0.0
        %554 = vmatprep.mubr.f32.mxu0 0.0
        %555 = vmatmul.mubr.f32.gmra.mrb[0].mxu0 %v413
        %v556 = vpop.f32.mrb[0].mxu0
        %v557 = vadd.f32 0.0, %v556
        %v558 = vpop.f32.mrb[0].mxu0
        %559 = vdwg.mxu0
        %560 = vst.msk [vmem:[#allocation3] sm:$0xff] %vm411, %v557
        %v561 = vld [vmem:[%s345] sm:$0xff]
        %v562 = vld [vmem:[#allocation10] sm:$0xff]
        %v563 = vld [vmem:[#allocation10 + $0x8] sm:$0xff]
        %v564 = vld [vmem:[#allocation10 + $0x10] sm:$0xff]
        %v565 = vld [vmem:[#allocation10 + $0x18] sm:$0xff]
        %v567 = vsel %vm411, %v561, 0
        %569 = vmatprep.subr.mxu0 0.0
        %570 = vmatpush1.msra.mxu0 %v562
        %571 = vmatprep.subr.mxu0 0.0
        %572 = vmatpush1.msra.mxu0 %v563
        %573 = vmatprep.subr.mxu0 0.0
        %574 = vmatpush1.msra.mxu0 %v564
        %575 = vmatprep.subr.mxu0 0.0
        %576 = vmatpush1.msra.mxu0 %v565
        %577 = vmatprep.subr.mxu0 0.0
        %578 = vmatpush1.msra.mxu0 0.0
        %579 = vmatprep.subr.mxu0 0.0
        %580 = vmatpush1.msra.mxu0 0.0
        %581 = vmatprep.subr.mxu0 0.0
        %582 = vmatpush1.msra.mxu0 0.0
        %583 = vmatprep.subr.mxu0 0.0
        %584 = vmatpush1.msra.mxu0 0.0
        %585 = vmatprep.subr.mxu0 0.0
        %586 = vmatpush1.msra.mxu0 0.0
        %587 = vmatprep.subr.mxu0 0.0
        %588 = vmatpush1.msra.mxu0 0.0
        %589 = vmatprep.subr.mxu0 0.0
        %590 = vmatpush1.msra.mxu0 0.0
        %591 = vmatprep.subr.mxu0 0.0
        %592 = vmatpush1.msra.mxu0 0.0
        %593 = vmatprep.subr.mxu0 0.0
        %594 = vmatpush1.msra.mxu0 0.0
        %595 = vmatprep.subr.mxu0 0.0
        %596 = vmatpush1.msra.mxu0 0.0
        %597 = vmatprep.subr.mxu0 0.0
        %598 = vmatpush1.msra.mxu0 0.0
        %599 = vmatprep.subr.mxu0 0.0
        %600 = vmatpush1.msra.mxu0 0.0
        %601 = vmatprep.subr.mxu0 0.0
        %602 = vmatpush1.msra.mxu0 0.0
        %603 = vmatprep.subr.mxu0 0.0
        %604 = vmatpush1.msra.mxu0 0.0
        %605 = vmatprep.subr.mxu0 0.0
        %606 = vmatpush1.msra.mxu0 0.0
        %607 = vmatprep.subr.mxu0 0.0
        %608 = vmatpush1.msra.mxu0 0.0
        %609 = vmatprep.subr.mxu0 0.0
        %610 = vmatpush1.msra.mxu0 0.0
        %611 = vmatprep.subr.mxu0 0.0
        %612 = vmatpush1.msra.mxu0 0.0
        %613 = vmatprep.subr.mxu0 0.0
        %614 = vmatpush1.msra.mxu0 0.0
        %615 = vmatprep.subr.mxu0 0.0
        %616 = vmatpush1.msra.mxu0 0.0
        %617 = vmatprep.subr.mxu0 0.0
        %618 = vmatpush1.msra.mxu0 0.0
        %619 = vmatprep.subr.mxu0 0.0
        %620 = vmatpush1.msra.mxu0 0.0
        %621 = vmatprep.subr.mxu0 0.0
        %622 = vmatpush1.msra.mxu0 0.0
        %623 = vmatprep.subr.mxu0 0.0
        %624 = vmatpush1.msra.mxu0 0.0
        %625 = vmatprep.subr.mxu0 0.0
        %626 = vmatpush1.msra.mxu0 0.0
        %627 = vmatprep.subr.mxu0 0.0
        %628 = vmatpush1.msra.mxu0 0.0
        %629 = vmatprep.subr.mxu0 0.0
        %630 = vmatpush1.msra.mxu0 0.0
        %631 = vmatprep.subr.mxu0 0.0
        %632 = vmatpush1.msra.mxu0 0.0
        %633 = vmatprep.mubr.f32.mxu0 0.0
        %634 = vmatmul.mubr.f32.gmra.mrb[0].mxu0 %v567
        %v635 = vpop.f32.mrb[0].mxu0
        %v636 = vadd.f32 0.0, %v635
        %v637 = vpop.f32.mrb[0].mxu0
        %638 = vdwg.mxu0
        %v639 = vld [vmem:[#allocation2] sm:$0xff]
        %v640 = vld [vmem:[#allocation3] sm:$0xff]
        %vm641 = vcmask 64512
        %v643 = vsel %vm641, %v636, 0
        %v646 = vsel %vm641, %v639, 0
        %648 = vmatprep.subr.mxu0 0.0
        %649 = vmatpush1.xpose.msra.mxu0 %v646
        %650 = vmatprep.subr.mxu0 0.0
        %651 = vmatpush1.xpose.msra.mxu0 0.0
        %652 = vmatprep.subr.mxu0 0.0
        %653 = vmatpush1.xpose.msra.mxu0 0.0
        %654 = vmatprep.subr.mxu0 0.0
        %655 = vmatpush1.xpose.msra.mxu0 0.0
        %656 = vmatprep.subr.mxu0 0.0
        %657 = vmatpush1.xpose.msra.mxu0 0.0
        %658 = vmatprep.subr.mxu0 0.0
        %659 = vmatpush1.xpose.msra.mxu0 0.0
        %660 = vmatprep.subr.mxu0 0.0
        %661 = vmatpush1.xpose.msra.mxu0 0.0
        %662 = vmatprep.subr.mxu0 0.0
        %663 = vmatpush1.xpose.msra.mxu0 0.0
        %664 = vmatprep.subr.mxu0 0.0
        %665 = vmatpush1.xpose.msra.mxu0 0.0
        %666 = vmatprep.subr.mxu0 0.0
        %667 = vmatpush1.xpose.msra.mxu0 0.0
        %668 = vmatprep.subr.mxu0 0.0
        %669 = vmatpush1.xpose.msra.mxu0 0.0
        %670 = vmatprep.subr.mxu0 0.0
        %671 = vmatpush1.xpose.msra.mxu0 0.0
        %672 = vmatprep.subr.mxu0 0.0
        %673 = vmatpush1.xpose.msra.mxu0 0.0
        %674 = vmatprep.subr.mxu0 0.0
        %675 = vmatpush1.xpose.msra.mxu0 0.0
        %676 = vmatprep.subr.mxu0 0.0
        %677 = vmatpush1.xpose.msra.mxu0 0.0
        %678 = vmatprep.subr.mxu0 0.0
        %679 = vmatpush1.xpose.msra.mxu0 0.0
        %680 = vmatprep.subr.mxu0 0.0
        %681 = vmatpush1.xpose.msra.mxu0 0.0
        %682 = vmatprep.subr.mxu0 0.0
        %683 = vmatpush1.xpose.msra.mxu0 0.0
        %684 = vmatprep.subr.mxu0 0.0
        %685 = vmatpush1.xpose.msra.mxu0 0.0
        %686 = vmatprep.subr.mxu0 0.0
        %687 = vmatpush1.xpose.msra.mxu0 0.0
        %688 = vmatprep.subr.mxu0 0.0
        %689 = vmatpush1.xpose.msra.mxu0 0.0
        %690 = vmatprep.subr.mxu0 0.0
        %691 = vmatpush1.xpose.msra.mxu0 0.0
        %692 = vmatprep.subr.mxu0 0.0
        %693 = vmatpush1.xpose.msra.mxu0 0.0
        %694 = vmatprep.subr.mxu0 0.0
        %695 = vmatpush1.xpose.msra.mxu0 0.0
        %696 = vmatprep.subr.mxu0 0.0
        %697 = vmatpush1.xpose.msra.mxu0 0.0
        %698 = vmatprep.subr.mxu0 0.0
        %699 = vmatpush1.xpose.msra.mxu0 0.0
        %700 = vmatprep.subr.mxu0 0.0
        %701 = vmatpush1.xpose.msra.mxu0 0.0
        %702 = vmatprep.subr.mxu0 0.0
        %703 = vmatpush1.xpose.msra.mxu0 0.0
        %704 = vmatprep.subr.mxu0 0.0
        %705 = vmatpush1.xpose.msra.mxu0 0.0
        %706 = vmatprep.subr.mxu0 0.0
        %707 = vmatpush1.xpose.msra.mxu0 0.0
        %708 = vmatprep.subr.mxu0 0.0
        %709 = vmatpush1.xpose.msra.mxu0 0.0
        %710 = vmatprep.subr.mxu0 0.0
        %711 = vmatpush1.xpose.msra.mxu0 0.0
        %712 = vmatprep.mubr.f32.mxu0 0.0
        %713 = vmatmul.mubr.f32.gmra.mrb[0].mxu0 %v643
        %v714 = vpop.f32.mrb[0].mxu0
        %v715 = vadd.f32 0.0, %v714
        %v716 = vpop.f32.mrb[0].mxu0
        %717 = vdwg.mxu0
        %v718 = vsel %vm641, %v715, -inf
        %719 = vmax.xlane.f32.xlu0 %v718
        %v720 = vpop.xlane.xlu0 %719
        %v721 = vsub.f32 %v715, %v720
        %v722 = vmul.f32 %v721, 1.442695
        %v723 = vpow.pop %v722
        %v724 = vsel %vm641, %v723, 0.0
        %725 = vadd.xlane.f32.xlu0 %v724
        %v726 = vpop.xlane.xlu0 %725
        %v728 = vsel %vm641, %v723, 0
        %730 = vmatprep.subr.mxu0 0.0
        %731 = vmatpush1.msra.mxu0 %v640
        %732 = vmatprep.subr.mxu0 0.0
        %733 = vmatpush1.msra.mxu0 0.0
        %734 = vmatprep.subr.mxu0 0.0
        %735 = vmatpush1.msra.mxu0 0.0
        %736 = vmatprep.subr.mxu0 0.0
        %737 = vmatpush1.msra.mxu0 0.0
        %738 = vmatprep.subr.mxu0 0.0
        %739 = vmatpush1.msra.mxu0 0.0
        %740 = vmatprep.subr.mxu0 0.0
        %741 = vmatpush1.msra.mxu0 0.0
        %742 = vmatprep.subr.mxu0 0.0
        %743 = vmatpush1.msra.mxu0 0.0
        %744 = vmatprep.subr.mxu0 0.0
        %745 = vmatpush1.msra.mxu0 0.0
        %746 = vmatprep.subr.mxu0 0.0
        %747 = vmatpush1.msra.mxu0 0.0
        %748 = vmatprep.subr.mxu0 0.0
        %749 = vmatpush1.msra.mxu0 0.0
        %750 = vmatprep.subr.mxu0 0.0
        %751 = vmatpush1.msra.mxu0 0.0
        %752 = vmatprep.subr.mxu0 0.0
        %753 = vmatpush1.msra.mxu0 0.0
        %754 = vmatprep.subr.mxu0 0.0
        %755 = vmatpush1.msra.mxu0 0.0
        %756 = vmatprep.subr.mxu0 0.0
        %757 = vmatpush1.msra.mxu0 0.0
        %758 = vmatprep.subr.mxu0 0.0
        %759 = vmatpush1.msra.mxu0 0.0
        %760 = vmatprep.subr.mxu0 0.0
        %761 = vmatpush1.msra.mxu0 0.0
        %762 = vmatprep.subr.mxu0 0.0
        %763 = vmatpush1.msra.mxu0 0.0
        %764 = vmatprep.subr.mxu0 0.0
        %765 = vmatpush1.msra.mxu0 0.0
        %766 = vmatprep.subr.mxu0 0.0
        %767 = vmatpush1.msra.mxu0 0.0
        %768 = vmatprep.subr.mxu0 0.0
        %769 = vmatpush1.msra.mxu0 0.0
        %770 = vmatprep.subr.mxu0 0.0
        %771 = vmatpush1.msra.mxu0 0.0
        %772 = vmatprep.subr.mxu0 0.0
        %773 = vmatpush1.msra.mxu0 0.0
        %774 = vmatprep.subr.mxu0 0.0
        %775 = vmatpush1.msra.mxu0 0.0
        %776 = vmatprep.subr.mxu0 0.0
        %777 = vmatpush1.msra.mxu0 0.0
        %778 = vmatprep.subr.mxu0 0.0
        %779 = vmatpush1.msra.mxu0 0.0
        %780 = vmatprep.subr.mxu0 0.0
        %781 = vmatpush1.msra.mxu0 0.0
        %782 = vmatprep.subr.mxu0 0.0
        %783 = vmatpush1.msra.mxu0 0.0
        %784 = vmatprep.subr.mxu0 0.0
        %785 = vmatpush1.msra.mxu0 0.0
        %786 = vmatprep.subr.mxu0 0.0
        %787 = vmatpush1.msra.mxu0 0.0
        %788 = vmatprep.subr.mxu0 0.0
        %789 = vmatpush1.msra.mxu0 0.0
        %790 = vmatprep.subr.mxu0 0.0
        %791 = vmatpush1.msra.mxu0 0.0
        %792 = vmatprep.subr.mxu0 0.0
        %793 = vmatpush1.msra.mxu0 0.0
        %794 = vmatprep.mubr.f32.mxu0 0.0
        %795 = vmatmul.mubr.f32.gmra.mrb[0].mxu0 %v728
        %v796 = vpop.f32.mrb[0].mxu0
        %v797 = vadd.f32 0.0, %v796
        %v798 = vpop.f32.mrb[0].mxu0
        %799 = vdwg.mxu0
        %v800 = vrcp.pop %v726
        %v801 = vmul.f32 %v797, %v800
        %802 = vst.msk [vmem:[#allocation4] sm:$0xff] %vm641, %v801
        %v803 = vld [vmem:[#allocation2] sm:$0xff]
        %v804 = vld [vmem:[#allocation3] sm:$0xff]
        %805 = vrot.lane.b32.xlu0 %v636, 120
        %v806 = vpop.permute.xlu0 %805
        %808 = vrot.lane.b32.xlu0 %v803, 120
        %v809 = vpop.permute.xlu0 %808
        %v810 = vsel %vm641, %v806, 0
        %v812 = vsel %vm641, %v809, 0
        %814 = vmatprep.subr.mxu0 0.0
        %815 = vmatpush1.xpose.msra.mxu0 %v812
        %816 = vmatprep.subr.mxu0 0.0
        %817 = vmatpush1.xpose.msra.mxu0 0.0
        %818 = vmatprep.subr.mxu0 0.0
        %819 = vmatpush1.xpose.msra.mxu0 0.0
        %820 = vmatprep.subr.mxu0 0.0
        %821 = vmatpush1.xpose.msra.mxu0 0.0
        %822 = vmatprep.subr.mxu0 0.0
        %823 = vmatpush1.xpose.msra.mxu0 0.0
        %824 = vmatprep.subr.mxu0 0.0
        %825 = vmatpush1.xpose.msra.mxu0 0.0
        %826 = vmatprep.subr.mxu0 0.0
        %827 = vmatpush1.xpose.msra.mxu0 0.0
        %828 = vmatprep.subr.mxu0 0.0
        %829 = vmatpush1.xpose.msra.mxu0 0.0
        %830 = vmatprep.subr.mxu0 0.0
        %831 = vmatpush1.xpose.msra.mxu0 0.0
        %832 = vmatprep.subr.mxu0 0.0
        %833 = vmatpush1.xpose.msra.mxu0 0.0
        %834 = vmatprep.subr.mxu0 0.0
        %835 = vmatpush1.xpose.msra.mxu0 0.0
        %836 = vmatprep.subr.mxu0 0.0
        %837 = vmatpush1.xpose.msra.mxu0 0.0
        %838 = vmatprep.subr.mxu0 0.0
        %839 = vmatpush1.xpose.msra.mxu0 0.0
        %840 = vmatprep.subr.mxu0 0.0
        %841 = vmatpush1.xpose.msra.mxu0 0.0
        %842 = vmatprep.subr.mxu0 0.0
        %843 = vmatpush1.xpose.msra.mxu0 0.0
        %844 = vmatprep.subr.mxu0 0.0
        %845 = vmatpush1.xpose.msra.mxu0 0.0
        %846 = vmatprep.subr.mxu0 0.0
        %847 = vmatpush1.xpose.msra.mxu0 0.0
        %848 = vmatprep.subr.mxu0 0.0
        %849 = vmatpush1.xpose.msra.mxu0 0.0
        %850 = vmatprep.subr.mxu0 0.0
        %851 = vmatpush1.xpose.msra.mxu0 0.0
        %852 = vmatprep.subr.mxu0 0.0
        %853 = vmatpush1.xpose.msra.mxu0 0.0
        %854 = vmatprep.subr.mxu0 0.0
        %855 = vmatpush1.xpose.msra.mxu0 0.0
        %856 = vmatprep.subr.mxu0 0.0
        %857 = vmatpush1.xpose.msra.mxu0 0.0
        %858 = vmatprep.subr.mxu0 0.0
        %859 = vmatpush1.xpose.msra.mxu0 0.0
        %860 = vmatprep.subr.mxu0 0.0
        %861 = vmatpush1.xpose.msra.mxu0 0.0
        %862 = vmatprep.subr.mxu0 0.0
        %863 = vmatpush1.xpose.msra.mxu0 0.0
        %864 = vmatprep.subr.mxu0 0.0
        %865 = vmatpush1.xpose.msra.mxu0 0.0
        %866 = vmatprep.subr.mxu0 0.0
        %867 = vmatpush1.xpose.msra.mxu0 0.0
        %868 = vmatprep.subr.mxu0 0.0
        %869 = vmatpush1.xpose.msra.mxu0 0.0
        %870 = vmatprep.subr.mxu0 0.0
        %871 = vmatpush1.xpose.msra.mxu0 0.0
        %872 = vmatprep.subr.mxu0 0.0
        %873 = vmatpush1.xpose.msra.mxu0 0.0
        %874 = vmatprep.subr.mxu0 0.0
        %875 = vmatpush1.xpose.msra.mxu0 0.0
        %876 = vmatprep.subr.mxu0 0.0
        %877 = vmatpush1.xpose.msra.mxu0 0.0
        %878 = vmatprep.mubr.f32.mxu0 0.0
        %879 = vmatmul.mubr.f32.gmra.mrb[0].mxu0 %v810
        %v880 = vpop.f32.mrb[0].mxu0
        %v881 = vadd.f32 0.0, %v880
        %v882 = vpop.f32.mrb[0].mxu0
        %883 = vdwg.mxu0
        %v884 = vsel %vm641, %v881, -inf
        %885 = vmax.xlane.f32.xlu0 %v884
        %v886 = vpop.xlane.xlu0 %885
        %v887 = vsub.f32 %v881, %v886
        %v888 = vmul.f32 %v887, 1.442695
        %v889 = vpow.pop %v888
        %v890 = vsel %vm641, %v889, 0.0
        %891 = vadd.xlane.f32.xlu0 %v890
        %v892 = vpop.xlane.xlu0 %891
        %894 = vrot.lane.b32.xlu0 %v804, 120
        %v895 = vpop.permute.xlu0 %894
        %v898 = vsel %vm641, %v889, 0
        %900 = vmatprep.subr.mxu0 0.0
        %901 = vmatpush1.msra.mxu0 %v895
        %902 = vmatprep.subr.mxu0 0.0
        %903 = vmatpush1.msra.mxu0 0.0
        %904 = vmatprep.subr.mxu0 0.0
        %905 = vmatpush1.msra.mxu0 0.0
        %906 = vmatprep.subr.mxu0 0.0
        %907 = vmatpush1.msra.mxu0 0.0
        %908 = vmatprep.subr.mxu0 0.0
        %909 = vmatpush1.msra.mxu0 0.0
        %910 = vmatprep.subr.mxu0 0.0
        %911 = vmatpush1.msra.mxu0 0.0
        %912 = vmatprep.subr.mxu0 0.0
        %913 = vmatpush1.msra.mxu0 0.0
        %914 = vmatprep.subr.mxu0 0.0
        %915 = vmatpush1.msra.mxu0 0.0
        %916 = vmatprep.subr.mxu0 0.0
        %917 = vmatpush1.msra.mxu0 0.0
        %918 = vmatprep.subr.mxu0 0.0
        %919 = vmatpush1.msra.mxu0 0.0
        %920 = vmatprep.subr.mxu0 0.0
        %921 = vmatpush1.msra.mxu0 0.0
        %922 = vmatprep.subr.mxu0 0.0
        %923 = vmatpush1.msra.mxu0 0.0
        %924 = vmatprep.subr.mxu0 0.0
        %925 = vmatpush1.msra.mxu0 0.0
        %926 = vmatprep.subr.mxu0 0.0
        %927 = vmatpush1.msra.mxu0 0.0
        %928 = vmatprep.subr.mxu0 0.0
        %929 = vmatpush1.msra.mxu0 0.0
        %930 = vmatprep.subr.mxu0 0.0
        %931 = vmatpush1.msra.mxu0 0.0
        %932 = vmatprep.subr.mxu0 0.0
        %933 = vmatpush1.msra.mxu0 0.0
        %934 = vmatprep.subr.mxu0 0.0
        %935 = vmatpush1.msra.mxu0 0.0
        %936 = vmatprep.subr.mxu0 0.0
        %937 = vmatpush1.msra.mxu0 0.0
        %938 = vmatprep.subr.mxu0 0.0
        %939 = vmatpush1.msra.mxu0 0.0
        %940 = vmatprep.subr.mxu0 0.0
        %941 = vmatpush1.msra.mxu0 0.0
        %942 = vmatprep.subr.mxu0 0.0
        %943 = vmatpush1.msra.mxu0 0.0
        %944 = vmatprep.subr.mxu0 0.0
        %945 = vmatpush1.msra.mxu0 0.0
        %946 = vmatprep.subr.mxu0 0.0
        %947 = vmatpush1.msra.mxu0 0.0
        %948 = vmatprep.subr.mxu0 0.0
        %949 = vmatpush1.msra.mxu0 0.0
        %950 = vmatprep.subr.mxu0 0.0
        %951 = vmatpush1.msra.mxu0 0.0
        %952 = vmatprep.subr.mxu0 0.0
        %953 = vmatpush1.msra.mxu0 0.0
        %954 = vmatprep.subr.mxu0 0.0
        %955 = vmatpush1.msra.mxu0 0.0
        %956 = vmatprep.subr.mxu0 0.0
        %957 = vmatpush1.msra.mxu0 0.0
        %958 = vmatprep.subr.mxu0 0.0
        %959 = vmatpush1.msra.mxu0 0.0
        %960 = vmatprep.subr.mxu0 0.0
        %961 = vmatpush1.msra.mxu0 0.0
        %962 = vmatprep.subr.mxu0 0.0
        %963 = vmatpush1.msra.mxu0 0.0
        %964 = vmatprep.mubr.f32.mxu0 0.0
        %965 = vmatmul.mubr.f32.gmra.mrb[0].mxu0 %v898
        %v966 = vpop.f32.mrb[0].mxu0
        %v967 = vadd.f32 0.0, %v966
        %v968 = vpop.f32.mrb[0].mxu0
        %969 = vdwg.mxu0
        %v970 = vrcp.pop %v892
        %v971 = vmul.f32 %v967, %v970
        %973 = vrot.lane.b32.xlu0 %v971, 8
        %v974 = vpop.permute.xlu0 %973
        %vm976 = vcmask 130112
        %977 = vst.msk [vmem:[#allocation4] sm:$0xff] %vm976, %v974
        %v978 = vld [vmem:[#allocation2] sm:$0xff]
        %v979 = vld [vmem:[#allocation3] sm:$0xff]
        %980 = vrot.lane.b32.xlu0 %v636, 112
        %v981 = vpop.permute.xlu0 %980
        %983 = vrot.lane.b32.xlu0 %v978, 112
        %v984 = vpop.permute.xlu0 %983
        %v985 = vsel %vm641, %v981, 0
        %v987 = vsel %vm641, %v984, 0
        %989 = vmatprep.subr.mxu0 0.0
        %990 = vmatpush1.xpose.msra.mxu0 %v987
        %991 = vmatprep.subr.mxu0 0.0
        %992 = vmatpush1.xpose.msra.mxu0 0.0
        %993 = vmatprep.subr.mxu0 0.0
        %994 = vmatpush1.xpose.msra.mxu0 0.0
        %995 = vmatprep.subr.mxu0 0.0
        %996 = vmatpush1.xpose.msra.mxu0 0.0
        %997 = vmatprep.subr.mxu0 0.0
        %998 = vmatpush1.xpose.msra.mxu0 0.0
        %999 = vmatprep.subr.mxu0 0.0
        %1000 = vmatpush1.xpose.msra.mxu0 0.0
        %1001 = vmatprep.subr.mxu0 0.0
        %1002 = vmatpush1.xpose.msra.mxu0 0.0
        %1003 = vmatprep.subr.mxu0 0.0
        %1004 = vmatpush1.xpose.msra.mxu0 0.0
        %1005 = vmatprep.subr.mxu0 0.0
        %1006 = vmatpush1.xpose.msra.mxu0 0.0
        %1007 = vmatprep.subr.mxu0 0.0
        %1008 = vmatpush1.xpose.msra.mxu0 0.0
        %1009 = vmatprep.subr.mxu0 0.0
        %1010 = vmatpush1.xpose.msra.mxu0 0.0
        %1011 = vmatprep.subr.mxu0 0.0
        %1012 = vmatpush1.xpose.msra.mxu0 0.0
        %1013 = vmatprep.subr.mxu0 0.0
        %1014 = vmatpush1.xpose.msra.mxu0 0.0
        %1015 = vmatprep.subr.mxu0 0.0
        %1016 = vmatpush1.xpose.msra.mxu0 0.0
        %1017 = vmatprep.subr.mxu0 0.0
        %1018 = vmatpush1.xpose.msra.mxu0 0.0
        %1019 = vmatprep.subr.mxu0 0.0
        %1020 = vmatpush1.xpose.msra.mxu0 0.0
        %1021 = vmatprep.subr.mxu0 0.0
        %1022 = vmatpush1.xpose.msra.mxu0 0.0
        %1023 = vmatprep.subr.mxu0 0.0
        %1024 = vmatpush1.xpose.msra.mxu0 0.0
        %1025 = vmatprep.subr.mxu0 0.0
        %1026 = vmatpush1.xpose.msra.mxu0 0.0
        %1027 = vmatprep.subr.mxu0 0.0
        %1028 = vmatpush1.xpose.msra.mxu0 0.0
        %1029 = vmatprep.subr.mxu0 0.0
        %1030 = vmatpush1.xpose.msra.mxu0 0.0
        %1031 = vmatprep.subr.mxu0 0.0
        %1032 = vmatpush1.xpose.msra.mxu0 0.0
        %1033 = vmatprep.subr.mxu0 0.0
        %1034 = vmatpush1.xpose.msra.mxu0 0.0
        %1035 = vmatprep.subr.mxu0 0.0
        %1036 = vmatpush1.xpose.msra.mxu0 0.0
        %1037 = vmatprep.subr.mxu0 0.0
        %1038 = vmatpush1.xpose.msra.mxu0 0.0
        %1039 = vmatprep.subr.mxu0 0.0
        %1040 = vmatpush1.xpose.msra.mxu0 0.0
        %1041 = vmatprep.subr.mxu0 0.0
        %1042 = vmatpush1.xpose.msra.mxu0 0.0
        %1043 = vmatprep.subr.mxu0 0.0
        %1044 = vmatpush1.xpose.msra.mxu0 0.0
        %1045 = vmatprep.subr.mxu0 0.0
        %1046 = vmatpush1.xpose.msra.mxu0 0.0
        %1047 = vmatprep.subr.mxu0 0.0
        %1048 = vmatpush1.xpose.msra.mxu0 0.0
        %1049 = vmatprep.subr.mxu0 0.0
        %1050 = vmatpush1.xpose.msra.mxu0 0.0
        %1051 = vmatprep.subr.mxu0 0.0
        %1052 = vmatpush1.xpose.msra.mxu0 0.0
        %1053 = vmatprep.mubr.f32.mxu0 0.0
        %1054 = vmatmul.mubr.f32.gmra.mrb[0].mxu0 %v985
        %v1055 = vpop.f32.mrb[0].mxu0
        %v1056 = vadd.f32 0.0, %v1055
        %v1057 = vpop.f32.mrb[0].mxu0
        %1058 = vdwg.mxu0
        %v1059 = vsel %vm641, %v1056, -inf
        %1060 = vmax.xlane.f32.xlu0 %v1059
        %v1061 = vpop.xlane.xlu0 %1060
        %v1062 = vsub.f32 %v1056, %v1061
        %v1063 = vmul.f32 %v1062, 1.442695
        %v1064 = vpow.pop %v1063
        %v1065 = vsel %vm641, %v1064, 0.0
        %1066 = vadd.xlane.f32.xlu0 %v1065
        %v1067 = vpop.xlane.xlu0 %1066
        %1069 = vrot.lane.b32.xlu0 %v979, 112
        %v1070 = vpop.permute.xlu0 %1069
        %v1073 = vsel %vm641, %v1064, 0
        %1075 = vmatprep.subr.mxu0 0.0
        %1076 = vmatpush1.msra.mxu0 %v1070
        %1077 = vmatprep.subr.mxu0 0.0
        %1078 = vmatpush1.msra.mxu0 0.0
        %1079 = vmatprep.subr.mxu0 0.0
        %1080 = vmatpush1.msra.mxu0 0.0
        %1081 = vmatprep.subr.mxu0 0.0
        %1082 = vmatpush1.msra.mxu0 0.0
        %1083 = vmatprep.subr.mxu0 0.0
        %1084 = vmatpush1.msra.mxu0 0.0
        %1085 = vmatprep.subr.mxu0 0.0
        %1086 = vmatpush1.msra.mxu0 0.0
        %1087 = vmatprep.subr.mxu0 0.0
        %1088 = vmatpush1.msra.mxu0 0.0
        %1089 = vmatprep.subr.mxu0 0.0
        %1090 = vmatpush1.msra.mxu0 0.0
        %1091 = vmatprep.subr.mxu0 0.0
        %1092 = vmatpush1.msra.mxu0 0.0
        %1093 = vmatprep.subr.mxu0 0.0
        %1094 = vmatpush1.msra.mxu0 0.0
        %1095 = vmatprep.subr.mxu0 0.0
        %1096 = vmatpush1.msra.mxu0 0.0
        %1097 = vmatprep.subr.mxu0 0.0
        %1098 = vmatpush1.msra.mxu0 0.0
        %1099 = vmatprep.subr.mxu0 0.0
        %1100 = vmatpush1.msra.mxu0 0.0
        %1101 = vmatprep.subr.mxu0 0.0
        %1102 = vmatpush1.msra.mxu0 0.0
        %1103 = vmatprep.subr.mxu0 0.0
        %1104 = vmatpush1.msra.mxu0 0.0
        %1105 = vmatprep.subr.mxu0 0.0
        %1106 = vmatpush1.msra.mxu0 0.0
        %1107 = vmatprep.subr.mxu0 0.0
        %1108 = vmatpush1.msra.mxu0 0.0
        %1109 = vmatprep.subr.mxu0 0.0
        %1110 = vmatpush1.msra.mxu0 0.0
        %1111 = vmatprep.subr.mxu0 0.0
        %1112 = vmatpush1.msra.mxu0 0.0
        %1113 = vmatprep.subr.mxu0 0.0
        %1114 = vmatpush1.msra.mxu0 0.0
        %1115 = vmatprep.subr.mxu0 0.0
        %1116 = vmatpush1.msra.mxu0 0.0
        %1117 = vmatprep.subr.mxu0 0.0
        %1118 = vmatpush1.msra.mxu0 0.0
        %1119 = vmatprep.subr.mxu0 0.0
        %1120 = vmatpush1.msra.mxu0 0.0
        %1121 = vmatprep.subr.mxu0 0.0
        %1122 = vmatpush1.msra.mxu0 0.0
        %1123 = vmatprep.subr.mxu0 0.0
        %1124 = vmatpush1.msra.mxu0 0.0
        %1125 = vmatprep.subr.mxu0 0.0
        %1126 = vmatpush1.msra.mxu0 0.0
        %1127 = vmatprep.subr.mxu0 0.0
        %1128 = vmatpush1.msra.mxu0 0.0
        %1129 = vmatprep.subr.mxu0 0.0
        %1130 = vmatpush1.msra.mxu0 0.0
        %1131 = vmatprep.subr.mxu0 0.0
        %1132 = vmatpush1.msra.mxu0 0.0
        %1133 = vmatprep.subr.mxu0 0.0
        %1134 = vmatpush1.msra.mxu0 0.0
        %1135 = vmatprep.subr.mxu0 0.0
        %1136 = vmatpush1.msra.mxu0 0.0
        %1137 = vmatprep.subr.mxu0 0.0
        %1138 = vmatpush1.msra.mxu0 0.0
        %1139 = vmatprep.mubr.f32.mxu0 0.0
        %1140 = vmatmul.mubr.f32.gmra.mrb[0].mxu0 %v1073
        %v1141 = vpop.f32.mrb[0].mxu0
        %v1142 = vadd.f32 0.0, %v1141
        %v1143 = vpop.f32.mrb[0].mxu0
        %1144 = vdwg.mxu0
        %v1145 = vrcp.pop %v1067
        %v1146 = vmul.f32 %v1142, %v1145
        %1148 = vrot.lane.b32.xlu0 %v1146, 16
        %v1149 = vpop.permute.xlu0 %1148
        %vm1151 = vcmask 195712
        %1152 = vst.msk [vmem:[#allocation4] sm:$0xff] %vm1151, %v1149
        %v1153 = vld [vmem:[#allocation2] sm:$0xff]
        %v1154 = vld [vmem:[#allocation3] sm:$0xff]
        %1155 = vrot.lane.b32.xlu0 %v636, 104
        %v1156 = vpop.permute.xlu0 %1155
        %1158 = vrot.lane.b32.xlu0 %v1153, 104
        %v1159 = vpop.permute.xlu0 %1158
        %v1160 = vsel %vm641, %v1156, 0
        %v1162 = vsel %vm641, %v1159, 0
        %1164 = vmatprep.subr.mxu0 0.0
        %1165 = vmatpush1.xpose.msra.mxu0 %v1162
        %1166 = vmatprep.subr.mxu0 0.0
        %1167 = vmatpush1.xpose.msra.mxu0 0.0
        %1168 = vmatprep.subr.mxu0 0.0
        %1169 = vmatpush1.xpose.msra.mxu0 0.0
        %1170 = vmatprep.subr.mxu0 0.0
        %1171 = vmatpush1.xpose.msra.mxu0 0.0
        %1172 = vmatprep.subr.mxu0 0.0
        %1173 = vmatpush1.xpose.msra.mxu0 0.0
        %1174 = vmatprep.subr.mxu0 0.0
        %1175 = vmatpush1.xpose.msra.mxu0 0.0
        %1176 = vmatprep.subr.mxu0 0.0
        %1177 = vmatpush1.xpose.msra.mxu0 0.0
        %1178 = vmatprep.subr.mxu0 0.0
        %1179 = vmatpush1.xpose.msra.mxu0 0.0
        %1180 = vmatprep.subr.mxu0 0.0
        %1181 = vmatpush1.xpose.msra.mxu0 0.0
        %1182 = vmatprep.subr.mxu0 0.0
        %1183 = vmatpush1.xpose.msra.mxu0 0.0
        %1184 = vmatprep.subr.mxu0 0.0
        %1185 = vmatpush1.xpose.msra.mxu0 0.0
        %1186 = vmatprep.subr.mxu0 0.0
        %1187 = vmatpush1.xpose.msra.mxu0 0.0
        %1188 = vmatprep.subr.mxu0 0.0
        %1189 = vmatpush1.xpose.msra.mxu0 0.0
        %1190 = vmatprep.subr.mxu0 0.0
        %1191 = vmatpush1.xpose.msra.mxu0 0.0
        %1192 = vmatprep.subr.mxu0 0.0
        %1193 = vmatpush1.xpose.msra.mxu0 0.0
        %1194 = vmatprep.subr.mxu0 0.0
        %1195 = vmatpush1.xpose.msra.mxu0 0.0
        %1196 = vmatprep.subr.mxu0 0.0
        %1197 = vmatpush1.xpose.msra.mxu0 0.0
        %1198 = vmatprep.subr.mxu0 0.0
        %1199 = vmatpush1.xpose.msra.mxu0 0.0
        %1200 = vmatprep.subr.mxu0 0.0
        %1201 = vmatpush1.xpose.msra.mxu0 0.0
        %1202 = vmatprep.subr.mxu0 0.0
        %1203 = vmatpush1.xpose.msra.mxu0 0.0
        %1204 = vmatprep.subr.mxu0 0.0
        %1205 = vmatpush1.xpose.msra.mxu0 0.0
        %1206 = vmatprep.subr.mxu0 0.0
        %1207 = vmatpush1.xpose.msra.mxu0 0.0
        %1208 = vmatprep.subr.mxu0 0.0
        %1209 = vmatpush1.xpose.msra.mxu0 0.0
        %1210 = vmatprep.subr.mxu0 0.0
        %1211 = vmatpush1.xpose.msra.mxu0 0.0
        %1212 = vmatprep.subr.mxu0 0.0
        %1213 = vmatpush1.xpose.msra.mxu0 0.0
        %1214 = vmatprep.subr.mxu0 0.0
        %1215 = vmatpush1.xpose.msra.mxu0 0.0
        %1216 = vmatprep.subr.mxu0 0.0
        %1217 = vmatpush1.xpose.msra.mxu0 0.0
        %1218 = vmatprep.subr.mxu0 0.0
        %1219 = vmatpush1.xpose.msra.mxu0 0.0
        %1220 = vmatprep.subr.mxu0 0.0
        %1221 = vmatpush1.xpose.msra.mxu0 0.0
        %1222 = vmatprep.subr.mxu0 0.0
        %1223 = vmatpush1.xpose.msra.mxu0 0.0
        %1224 = vmatprep.subr.mxu0 0.0
        %1225 = vmatpush1.xpose.msra.mxu0 0.0
        %1226 = vmatprep.subr.mxu0 0.0
        %1227 = vmatpush1.xpose.msra.mxu0 0.0
        %1228 = vmatprep.mubr.f32.mxu0 0.0
        %1229 = vmatmul.mubr.f32.gmra.mrb[0].mxu0 %v1160
        %v1230 = vpop.f32.mrb[0].mxu0
        %v1231 = vadd.f32 0.0, %v1230
        %v1232 = vpop.f32.mrb[0].mxu0
        %1233 = vdwg.mxu0
        %v1234 = vsel %vm641, %v1231, -inf
        %1235 = vmax.xlane.f32.xlu0 %v1234
        %v1236 = vpop.xlane.xlu0 %1235
        %v1237 = vsub.f32 %v1231, %v1236
        %v1238 = vmul.f32 %v1237, 1.442695
        %v1239 = vpow.pop %v1238
        %v1240 = vsel %vm641, %v1239, 0.0
        %1241 = vadd.xlane.f32.xlu0 %v1240
        %v1242 = vpop.xlane.xlu0 %1241
        %1244 = vrot.lane.b32.xlu0 %v1154, 104
        %v1245 = vpop.permute.xlu0 %1244
        %v1248 = vsel %vm641, %v1239, 0
        %1250 = vmatprep.subr.mxu0 0.0
        %1251 = vmatpush1.msra.mxu0 %v1245
        %1252 = vmatprep.subr.mxu0 0.0
        %1253 = vmatpush1.msra.mxu0 0.0
        %1254 = vmatprep.subr.mxu0 0.0
        %1255 = vmatpush1.msra.mxu0 0.0
        %1256 = vmatprep.subr.mxu0 0.0
        %1257 = vmatpush1.msra.mxu0 0.0
        %1258 = vmatprep.subr.mxu0 0.0
        %1259 = vmatpush1.msra.mxu0 0.0
        %1260 = vmatprep.subr.mxu0 0.0
        %1261 = vmatpush1.msra.mxu0 0.0
        %1262 = vmatprep.subr.mxu0 0.0
        %1263 = vmatpush1.msra.mxu0 0.0
        %1264 = vmatprep.subr.mxu0 0.0
        %1265 = vmatpush1.msra.mxu0 0.0
        %1266 = vmatprep.subr.mxu0 0.0
        %1267 = vmatpush1.msra.mxu0 0.0
        %1268 = vmatprep.subr.mxu0 0.0
        %1269 = vmatpush1.msra.mxu0 0.0
        %1270 = vmatprep.subr.mxu0 0.0
        %1271 = vmatpush1.msra.mxu0 0.0
        %1272 = vmatprep.subr.mxu0 0.0
        %1273 = vmatpush1.msra.mxu0 0.0
        %1274 = vmatprep.subr.mxu0 0.0
        %1275 = vmatpush1.msra.mxu0 0.0
        %1276 = vmatprep.subr.mxu0 0.0
        %1277 = vmatpush1.msra.mxu0 0.0
        %1278 = vmatprep.subr.mxu0 0.0
        %1279 = vmatpush1.msra.mxu0 0.0
        %1280 = vmatprep.subr.mxu0 0.0
        %1281 = vmatpush1.msra.mxu0 0.0
        %1282 = vmatprep.subr.mxu0 0.0
        %1283 = vmatpush1.msra.mxu0 0.0
        %1284 = vmatprep.subr.mxu0 0.0
        %1285 = vmatpush1.msra.mxu0 0.0
        %1286 = vmatprep.subr.mxu0 0.0
        %1287 = vmatpush1.msra.mxu0 0.0
        %1288 = vmatprep.subr.mxu0 0.0
        %1289 = vmatpush1.msra.mxu0 0.0
        %1290 = vmatprep.subr.mxu0 0.0
        %1291 = vmatpush1.msra.mxu0 0.0
        %1292 = vmatprep.subr.mxu0 0.0
        %1293 = vmatpush1.msra.mxu0 0.0
        %1294 = vmatprep.subr.mxu0 0.0
        %1295 = vmatpush1.msra.mxu0 0.0
        %1296 = vmatprep.subr.mxu0 0.0
        %1297 = vmatpush1.msra.mxu0 0.0
        %1298 = vmatprep.subr.mxu0 0.0
        %1299 = vmatpush1.msra.mxu0 0.0
        %1300 = vmatprep.subr.mxu0 0.0
        %1301 = vmatpush1.msra.mxu0 0.0
        %1302 = vmatprep.subr.mxu0 0.0
        %1303 = vmatpush1.msra.mxu0 0.0
        %1304 = vmatprep.subr.mxu0 0.0
        %1305 = vmatpush1.msra.mxu0 0.0
        %1306 = vmatprep.subr.mxu0 0.0
        %1307 = vmatpush1.msra.mxu0 0.0
        %1308 = vmatprep.subr.mxu0 0.0
        %1309 = vmatpush1.msra.mxu0 0.0
        %1310 = vmatprep.subr.mxu0 0.0
        %1311 = vmatpush1.msra.mxu0 0.0
        %1312 = vmatprep.subr.mxu0 0.0
        %1313 = vmatpush1.msra.mxu0 0.0
        %1314 = vmatprep.mubr.f32.mxu0 0.0
        %1315 = vmatmul.mubr.f32.gmra.mrb[0].mxu0 %v1248
        %v1316 = vpop.f32.mrb[0].mxu0
        %v1317 = vadd.f32 0.0, %v1316
        %v1318 = vpop.f32.mrb[0].mxu0
        %1319 = vdwg.mxu0
        %v1320 = vrcp.pop %v1242
        %v1321 = vmul.f32 %v1317, %v1320
        %1323 = vrot.lane.b32.xlu0 %v1321, 24
        %v1324 = vpop.permute.xlu0 %1323
        %vm1326 = vcmask 261312
        %1327 = vst.msk [vmem:[#allocation4] sm:$0xff] %vm1326, %v1324
        %v1328 = vld [vmem:[#allocation4] sm:$0xff]
        %v1329 = vld [vmem:[#allocation14] sm:$0xff]
        %v1330 = vld [vmem:[#allocation14 + $0x8] sm:$0xff]
        %v1331 = vld [vmem:[#allocation14 + $0x10] sm:$0xff]
        %v1332 = vld [vmem:[#allocation14 + $0x18] sm:$0xff]
        %v1333 = vld [vmem:[%s6] sm:$0x1]
        %v1335 = vlaneseq
        %v1336 = vshrl.u32 %v1335, 7
        %v1337 = vsub.s32 0, %v1336
        %v1338 = vrot.slane %v1333, %v1337
        %v1341 = vsel %vm411, %v1328, 0
        %1343 = vmatprep.subr.mxu0 0.0
        %1344 = vmatpush1.msra.mxu0 %v1329
        %1345 = vmatprep.subr.mxu0 0.0
        %1346 = vmatpush1.msra.mxu0 %v1330
        %1347 = vmatprep.subr.mxu0 0.0
        %1348 = vmatpush1.msra.mxu0 %v1331
        %1349 = vmatprep.subr.mxu0 0.0
        %1350 = vmatpush1.msra.mxu0 %v1332
        %1351 = vmatprep.subr.mxu0 0.0
        %1352 = vmatpush1.msra.mxu0 0.0
        %1353 = vmatprep.subr.mxu0 0.0
        %1354 = vmatpush1.msra.mxu0 0.0
        %1355 = vmatprep.subr.mxu0 0.0
        %1356 = vmatpush1.msra.mxu0 0.0
        %1357 = vmatprep.subr.mxu0 0.0
        %1358 = vmatpush1.msra.mxu0 0.0
        %1359 = vmatprep.subr.mxu0 0.0
        %1360 = vmatpush1.msra.mxu0 0.0
        %1361 = vmatprep.subr.mxu0 0.0
        %1362 = vmatpush1.msra.mxu0 0.0
        %1363 = vmatprep.subr.mxu0 0.0
        %1364 = vmatpush1.msra.mxu0 0.0
        %1365 = vmatprep.subr.mxu0 0.0
        %1366 = vmatpush1.msra.mxu0 0.0
        %1367 = vmatprep.subr.mxu0 0.0
        %1368 = vmatpush1.msra.mxu0 0.0
        %1369 = vmatprep.subr.mxu0 0.0
        %1370 = vmatpush1.msra.mxu0 0.0
        %1371 = vmatprep.subr.mxu0 0.0
        %1372 = vmatpush1.msra.mxu0 0.0
        %1373 = vmatprep.subr.mxu0 0.0
        %1374 = vmatpush1.msra.mxu0 0.0
        %1375 = vmatprep.subr.mxu0 0.0
        %1376 = vmatpush1.msra.mxu0 0.0
        %1377 = vmatprep.subr.mxu0 0.0
        %1378 = vmatpush1.msra.mxu0 0.0
        %1379 = vmatprep.subr.mxu0 0.0
        %1380 = vmatpush1.msra.mxu0 0.0
        %1381 = vmatprep.subr.mxu0 0.0
        %1382 = vmatpush1.msra.mxu0 0.0
        %1383 = vmatprep.subr.mxu0 0.0
        %1384 = vmatpush1.msra.mxu0 0.0
        %1385 = vmatprep.subr.mxu0 0.0
        %1386 = vmatpush1.msra.mxu0 0.0
        %1387 = vmatprep.subr.mxu0 0.0
        %1388 = vmatpush1.msra.mxu0 0.0
        %1389 = vmatprep.subr.mxu0 0.0
        %1390 = vmatpush1.msra.mxu0 0.0
        %1391 = vmatprep.subr.mxu0 0.0
        %1392 = vmatpush1.msra.mxu0 0.0
        %1393 = vmatprep.subr.mxu0 0.0
        %1394 = vmatpush1.msra.mxu0 0.0
        %1395 = vmatprep.subr.mxu0 0.0
        %1396 = vmatpush1.msra.mxu0 0.0
        %1397 = vmatprep.subr.mxu0 0.0
        %1398 = vmatpush1.msra.mxu0 0.0
        %1399 = vmatprep.subr.mxu0 0.0
        %1400 = vmatpush1.msra.mxu0 0.0
        %1401 = vmatprep.subr.mxu0 0.0
        %1402 = vmatpush1.msra.mxu0 0.0
        %1403 = vmatprep.subr.mxu0 0.0
        %1404 = vmatpush1.msra.mxu0 0.0
        %1405 = vmatprep.subr.mxu0 0.0
        %1406 = vmatpush1.msra.mxu0 0.0
        %1407 = vmatprep.mubr.f32.mxu0 0.0
        %1408 = vmatmul.mubr.f32.gmra.mrb[0].mxu0 %v1341
        %v1409 = vpop.f32.mrb[0].mxu0
        %v1410 = vadd.f32 %v1338, %v1409
        %v1411 = vpop.f32.mrb[0].mxu0
        %1412 = vdwg.mxu0
        %1413 = vst.msk [vmem:[%s405] sm:$0xff] %vm411, %v1410
        %s1414 = sand.u32 %s210, 1
        %s1415 = scalar_lea.sflag [#allocation7], %s1414
        %s1416 = sand.u32 %s210, 1
        %s1417 = smul.addr %s1416, 8
        %s1418 = scalar_lea.vmem [#allocation16], %s1417
        // Predicated region
        $region73: #{tpu_custom_call.1} parent=47 // pred_check
          %p1419 = pneg %p220
        $region74: #{tpu_custom_call.1} parent=47 // pred_check_branch
          %1421 = sbr.rel (%p1419) target = $region76
        $region75: #{tpu_custom_call.1} parent=47 // pred_region
          %s1423 = ssub.s32 128, 128
          %1424 = vsyncadd %s1415, %s1423
          %s1425 = sadd.s32 %s34, %s33
          %s1426 = smul.addr %s1425, 128
          %s1427 = scalar_lea.hbm %s7, %s1426
          %s1429 = sshll.u32 %s1418, 4
          %s1430 = int_to_ptr.vmem [resolvable:$true] %s1429
          %1432 = dma.vmem_to_hbm [thread:$0]  %s1430, 128, %s1427, %s1415
        $region76: #{tpu_custom_call.1} parent=47 // pred_fallthru
          _
      $region48: #{tpu_custom_call.1} parent=5 // pred_fallthru
        _
      %p1433 = scmp.le.s32.totalorder 2, %s24
      // Predicated region
      $region77: #{tpu_custom_call.1} parent=5 // pred_check
        %p1434 = pneg %p1433
      $region78: #{tpu_custom_call.1} parent=5 // pred_check_branch
        %1436 = sbr.rel (%p1434) target = $region80
      $region79: #{tpu_custom_call.1} parent=5 // pred_region
        %s1437 = ssub.s32 %s24, 2
        // Predicated region
        $region81: #{tpu_custom_call.1} parent=79 // pred_check
          %p1438 = pneg %p226
        $region82: #{tpu_custom_call.1} parent=79 // pred_check_branch
          %1440 = sbr.rel (%p1438) target = $region84
        $region83: #{tpu_custom_call.1} parent=79 // pred_region
          %s1441 = sand.u32 %s211, 1
          %s1442 = scalar_lea.sflag [#allocation7], %s1441
          %s1443 = sand.u32 %s211, 1
          %s1444 = smul.addr %s1443, 8
          %s1445 = scalar_lea.vmem [#allocation16], %s1444
          %1446 = dma.done %s1442, 128
        $region84: #{tpu_custom_call.1} parent=79 // pred_fallthru
          _
      $region80: #{tpu_custom_call.1} parent=5 // pred_fallthru
        _
    $region6: #{tpu_custom_call.1} parent=1 // loop_footer
      %s28 = sadd.s32 1, %s24
    $region7: #{tpu_custom_call.1} parent=1 // loop_footer_branch
      %23 = sbr.rel target = $region3
    $region8: #{tpu_custom_call.1} parent=1 // loop_exit
      _
    %1447 = vsyncpa [#allocation6], 1
    %s1448 = scalar_lea.sflag [#allocation6], 1
    %1449 = vsyncpa %s1448, 1
    %1450 = vsyncpa [#allocation9], 1
    %s1451 = scalar_lea.sflag [#allocation9], 1
    %1452 = vsyncpa %s1451, 1
    %1453 = vsyncpa [#allocation12], 1
    %1454 = vsyncpa [#allocation15], 1
    %1455 = vsyncpa [#allocation7], 1
    %s1456 = scalar_lea.sflag [#allocation7], 1
    %1457 = vsyncpa %s1456, 1

</llo_original>
